<compile_context>
chip_gen: v6e
topology: v6e:2x2x1
jax: 0.10.0
libtpu: 0.0.40
codegen_flags: <defaults>
</compile_context>

<pallas_src>
import jax
import jax.numpy as jnp
from jax import lax
from jax.experimental import pallas as pl
from jax.experimental.pallas import tpu as pltpu


def _round_up(v, m):
    return (v + m - 1) // m * m


def _vmem_bytes(shape, itemsize=4):
    """VMEM footprint of a buffer including (8,128) tile padding of the minor dims."""
    if len(shape) == 1:
        lead, r, c = (), 1, shape[0]
    else:
        *lead, r, c = shape
    n = _round_up(max(r, 1), 8) * _round_up(max(c, 1), 128) * itemsize
    for d in lead:
        n *= max(d, 1)
    return n


def _weight_spec(shape):
    """Grid-invariant operand: single-buffer it (index_map is constant)."""
    idx = lambda n: (0,) * len(shape)
    try:
        return pl.BlockSpec(shape, idx, pipeline_mode=pl.Buffered(1))
    except TypeError:  # older JAX without pipeline_mode kwarg
        return pl.BlockSpec(shape, idx)


def attn_lstm_kernel(x_ref, wih_ref, whh_ref, b_ref, wl1_ref, bl1_ref,
                     out_ref, xg_sc, hs_sc):
    """One batch tile: LSTM recurrence + l1 + attention, all in VMEM/vregs.

    x_ref   : (1, S*BT, I)   f32  time-major rows: row t*BT + b = (step t, tile batch b)
    wih_ref : (I, 4Hp)       f32  W_ih^T (per-gate zero padded)
    whh_ref : (Hp, 4Hp)      f32  W_hh^T (per-gate zero padded)
    b_ref   : (1, 4Hp)       f32  b_ih + b_hh (padded)
    wl1_ref : (Hp, Hp)       f32  W_l1^T (padded)
    bl1_ref : (1, Hp)        f32
    out_ref : (1, BT, Hp)    f32
    xg_sc   : (S*BT, 4Hp)    f32  scratch: x @ W_ih^T + b for all steps
    hs_sc   : (S*BT, Hp)     f32  scratch: raw hidden states stacked over time
    """
    BT = out_ref.shape[1]
    Hp = wl1_ref.shape[0]
    S = x_ref.shape[1] // BT

    # Input projection + bias for ALL timesteps: one MXU call, parked in VMEM
    # scratch so the (S*BT, 4Hp) result never occupies the register file.
    xg_sc[...] = (jnp.dot(x_ref[0], wih_ref[...],
                          preferred_element_type=jnp.float32) + b_ref[...])

    whh = whh_ref[...]                                           # hoisted load

    # Lane mask selecting the g-gate lanes [2Hp, 3Hp).
    lane = lax.broadcasted_iota(jnp.int32, (BT, 4 * Hp), 1)
    g_lanes = jnp.logical_and(lane >= 2 * Hp, lane < 3 * Hp)

    # State carried as values (vregs); no per-step VMEM round trip.
    h = jnp.zeros((BT, Hp), jnp.float32)
    c = jnp.zeros((BT, Hp), jnp.float32)

    # Statically unrolled recurrence (S is small & static).
    for t in range(S):
        gates = xg_sc[t * BT:(t + 1) * BT, :] + jnp.dot(
            h, whh, preferred_element_type=jnp.float32)          # (BT, 4Hp)
        # Single EUP sigmoid over the full (BT, 4Hp): tanh(x) = 2*sigmoid(2x)-1,
        # so pre-scale g lanes by 2 (VPU), sigmoid once, fix up g lanes (VPU).
        a = jax.nn.sigmoid(jnp.where(g_lanes, 2.0 * gates, gates))
        act = jnp.where(g_lanes, 2.0 * a - 1.0, a)
        i_g = act[:, 0 * Hp:1 * Hp]
        f_g = act[:, 1 * Hp:2 * Hp]
        g_g = act[:, 2 * Hp:3 * Hp]
        o_g = act[:, 3 * Hp:4 * Hp]
        c = f_g * c + i_g * g_g
        h = o_g * jnp.tanh(c)
        hs_sc[t * BT:(t + 1) * BT, :] = h    # lane/sublane-dense, off the chain

    h_n = h                                                      # (BT, Hp)

    # l1 projection hoisted out of the loop: one well-shaped (S*BT,Hp)@(Hp,Hp).
    outs = (jnp.dot(hs_sc[...], wl1_ref[...],
                    preferred_element_type=jnp.float32)
            + bl1_ref[...])                                      # (S*BT, Hp)
    outs3 = outs.reshape(S, BT, Hp)          # sublane-split only (layout-safe)

    # Fused attention: one cross-lane reduce for all S*BT scores, then a
    # max-subtracted softmax over time and the weighted sum, all on the
    # (S, BT, *) view.  Padded lanes of h_n/outs are exactly zero.
    scores = jnp.sum(outs3 * h_n[None, :, :], axis=2, keepdims=True)   # (S, BT, 1)
    m = jnp.max(scores, axis=0, keepdims=True)                         # (1, BT, 1)
    e = jnp.exp(scores - m)                                            # (S, BT, 1)
    inv = pl.reciprocal(jnp.sum(e, axis=0, keepdims=True), approx=False)
    out_ref[0] = jnp.sum(outs3 * (e * inv), axis=0)                    # (BT, Hp)


def attn_lstm_forward(x, params, *, batch_tile=None):
    """x: (batch, in_size, seq) float32 -> (batch, hidd_size) float32."""
    w_ih, w_hh = params["w_ih"], params["w_hh"]
    b_ih, b_hh = params["b_ih"], params["b_hh"]
    w_l1, b_l1 = params["w_l1"], params["b_l1"]

    B, I, S = x.shape
    H = w_hh.shape[1]
    Hp = _round_up(H, 128)                   # lane-dense hidden dim

    # Batch tile: at least sublane-full (8), capped so the tile fits VMEM.
    if batch_tile is None:
        BT = min(256, _round_up(B, 8))
    else:
        BT = _round_up(max(batch_tile, 1), 8)
    B_pad = _round_up(B, BT)
    NT = B_pad // BT

    # ---- pad batch, build per-tile time-major rows: (NT, S*BT, I) ----
    xf = jnp.asarray(x, jnp.float32)
    if B_pad != B:
        xf = jnp.pad(xf, ((0, B_pad - B), (0, 0), (0, 0)))
    x_sbi = jnp.transpose(xf, (2, 0, 1))                         # (S, B_pad, I)
    x_tiles = (x_sbi.reshape(S, NT, BT, I)
               .transpose(1, 0, 2, 3)
               .reshape(NT, S * BT, I))

    # ---- per-gate zero padding of the weights to Hp (gate order i,f,g,o) ----
    def pad_gate_rows(w):                    # (4H, K) -> (4Hp, K)
        k = w.shape[1]
        w4 = jnp.asarray(w, jnp.float32).reshape(4, H, k)
        w4 = jnp.pad(w4, ((0, 0), (0, Hp - H), (0, 0)))
        return w4.reshape(4 * Hp, k)

    wih_p = pad_gate_rows(w_ih)                                  # (4Hp, I)
    whh_p = pad_gate_rows(w_hh)                                  # (4Hp, H)
    whh_p = jnp.pad(whh_p, ((0, 0), (0, Hp - H)))                # (4Hp, Hp)
    bias_p = (jnp.asarray(b_ih, jnp.float32)
              + jnp.asarray(b_hh, jnp.float32)).reshape(4, H)
    bias_p = jnp.pad(bias_p, ((0, 0), (0, Hp - H))).reshape(1, 4 * Hp)

    wih_t = wih_p.T                                              # (I, 4Hp)
    whh_t = whh_p.T                                              # (Hp, 4Hp)
    wl1_t = jnp.pad(jnp.asarray(w_l1, jnp.float32).T,
                    ((0, Hp - H), (0, Hp - H)))                  # (Hp, Hp)
    bl1 = jnp.pad(jnp.asarray(b_l1, jnp.float32),
                  (0, Hp - H))[None, :]                          # (1, Hp)

    # ---- explicit VMEM budget (x tile lane-pads I -> 128) ----
    working = (2 * _vmem_bytes((1, S * BT, I))                   # x tile (dbl buf)
               + _vmem_bytes((I, 4 * Hp)) + _vmem_bytes((Hp, 4 * Hp))
               + _vmem_bytes((1, 4 * Hp)) + _vmem_bytes((Hp, Hp))
               + _vmem_bytes((1, Hp))
               + 2 * _vmem_bytes((1, BT, Hp))                    # out tile (dbl buf)
               + _vmem_bytes((S * BT, 4 * Hp))                   # xg scratch
               + _vmem_bytes((S * BT, Hp)))                      # hs scratch
    vmem_limit = int(min(64 << 20, max(32 << 20, 2 * working)))

    out_tiles = pl.pallas_call(
        attn_lstm_kernel,
        out_shape=jax.ShapeDtypeStruct((NT, BT, Hp), jnp.float32),
        grid=(NT,),
        in_specs=[
            pl.BlockSpec((1, S * BT, I), lambda n: (n, 0, 0)),
            _weight_spec((I, 4 * Hp)),
            _weight_spec((Hp, 4 * Hp)),
            _weight_spec((1, 4 * Hp)),
            _weight_spec((Hp, Hp)),
            _weight_spec((1, Hp)),
        ],
        out_specs=pl.BlockSpec((1, BT, Hp), lambda n: (n, 0, 0)),
        scratch_shapes=[pltpu.VMEM((S * BT, 4 * Hp), jnp.float32),
                        pltpu.VMEM((S * BT, Hp), jnp.float32)],
        compiler_params=pltpu.CompilerParams(
            # batch tiles are independent -> shard across v7x TensorCores.
            dimension_semantics=("parallel",),
            vmem_limit_bytes=vmem_limit),
    )(x_tiles, wih_t, whh_t, bias_p, wl1_t, bl1)

    return out_tiles.reshape(B_pad, Hp)[:B, :H]


def attn_lstm_reference(x, params):
    """Pure-JAX reference mirroring the PyTorch forward exactly."""
    w_ih, w_hh = params["w_ih"], params["w_hh"]
    b_ih, b_hh = params["b_ih"], params["b_hh"]
    w_l1, b_l1 = params["w_l1"], params["b_l1"]

    x_sbi = jnp.transpose(x, (2, 0, 1))          # (S, B, I)
    S, B, I = x_sbi.shape
    H = w_hh.shape[1]

    def step(carry, x_t):
        h, c = carry
        gates = x_t @ w_ih.T + b_ih + h @ w_hh.T + b_hh
        i = jax.nn.sigmoid(gates[:, :H])
        f = jax.nn.sigmoid(gates[:, H:2 * H])
        g = jnp.tanh(gates[:, 2 * H:3 * H])
        o = jax.nn.sigmoid(gates[:, 3 * H:])
        c = f * c + i * g
        h = o * jnp.tanh(c)
        return (h, c), h

    (h_n, _), hs = lax.scan(step,
                            (jnp.zeros((B, H), jnp.float32),
                             jnp.zeros((B, H), jnp.float32)),
                            x_sbi)
    outs = hs @ w_l1.T + b_l1                    # (S, B, H)
    scores = jnp.einsum('sbh,bh->bs', outs, h_n)
    w = jax.nn.softmax(scores, axis=1)
    return jnp.einsum('sbh,bs->bh', outs, w)


if __name__ == "__main__":
    # Small shapes implied by the forward: x is (batch, in_size, seq).
    B, I, S, H = 2, 4, 8, 32

    key = jax.random.PRNGKey(0)
    ks = jax.random.split(key, 6)
    k = float(1.0 / jnp.sqrt(H))   # PyTorch default LSTM init: U(-1/sqrt(H), 1/sqrt(H))

    params = {
        "w_ih": jax.random.uniform(ks[0], (4 * H, I), jnp.float32, -k, k),
        "w_hh": jax.random.uniform(ks[1], (4 * H, H), jnp.float32, -k, k),
        "b_ih": jax.random.uniform(ks[2], (4 * H,), jnp.float32, -k, k),
        "b_hh": jax.random.uniform(ks[3], (4 * H,), jnp.float32, -k, k),
        # init_net(): l1.weight ~ U(-0.1, 0.1), l1.bias = 0
        "w_l1": jax.random.uniform(ks[4], (H, H), jnp.float32, -0.1, 0.1),
        "b_l1": jnp.zeros((H,), jnp.float32),
    }

    x = jax.random.normal(ks[5], (B, I, S), jnp.float32)

    out = jax.block_until_ready(attn_lstm_forward(x, params))
    ref = attn_lstm_reference(x, params)

    assert out.shape == (B, H), out.shape
    assert jnp.allclose(out, ref, rtol=1e-4, atol=2e-5), \
        float(jnp.max(jnp.abs(out - ref)))
    print("KERNEL_OK")
</pallas_src>

<mosaic_0001>
module attributes {stable_mosaic.version = 11 : i64} {
  func.func @attn_lstm_kernel(%arg0: i32, %arg1: memref<1x64x4xf32, #tpu.memory_space<vmem>>, %arg2: memref<4x512xf32, #tpu.memory_space<vmem>>, %arg3: memref<128x512xf32, #tpu.memory_space<vmem>>, %arg4: memref<1x512xf32, #tpu.memory_space<vmem>>, %arg5: memref<128x128xf32, #tpu.memory_space<vmem>>, %arg6: memref<1x128xf32, #tpu.memory_space<vmem>>, %arg7: memref<1x8x128xf32, #tpu.memory_space<vmem>>, %arg8: memref<64x512xf32, #tpu.memory_space<vmem>>, %arg9: memref<64x128xf32, #tpu.memory_space<vmem>>) attributes {dimension_semantics = [#tpu.dimension_semantics<parallel>], iteration_bounds = array<i64: 1>, scalar_prefetch = 0 : i64, scratch_operands = 2 : i64, tpu.core_type = #tpu.core_type<tc>, window_params = [{transform_indices = @transform_0, window_bounds = array<i64: 1, 64, 4>}, {pipeline_mode = #tpu.pipeline_mode<synchronous>, transform_indices = @transform_1, window_bounds = array<i64: 4, 512>}, {pipeline_mode = #tpu.pipeline_mode<synchronous>, transform_indices = @transform_2, window_bounds = array<i64: 128, 512>}, {pipeline_mode = #tpu.pipeline_mode<synchronous>, transform_indices = @transform_3, window_bounds = array<i64: 1, 512>}, {pipeline_mode = #tpu.pipeline_mode<synchronous>, transform_indices = @transform_4, window_bounds = array<i64: 128, 128>}, {pipeline_mode = #tpu.pipeline_mode<synchronous>, transform_indices = @transform_5, window_bounds = array<i64: 1, 128>}, {transform_indices = @transform_6, window_bounds = array<i64: 1, 8, 128>}]} {
    %c0 = arith.constant 0 : index
    %c0_0 = arith.constant 0 : index
    %c0_1 = arith.constant 0 : index
    %0 = vector.load %arg1[%c0, %c0_0, %c0_1] : memref<1x64x4xf32, #tpu.memory_space<vmem>>, vector<1x64x4xf32>
    %1 = vector.shape_cast %0 : vector<1x64x4xf32> to vector<64x4xf32>
    %c0_2 = arith.constant 0 : index
    %c0_3 = arith.constant 0 : index
    %2 = vector.load %arg2[%c0_2, %c0_3] : memref<4x512xf32, #tpu.memory_space<vmem>>, vector<4x512xf32>
    %cst = arith.constant dense<0.000000e+00> : vector<64x512xf32>
    %3 = tpu.matmul %1, %2, %cst {dimension_numbers = #tpu.dot_dimension_numbers<[1], [0], [0], [1], [0, 0, 1, 1], [], []>} : vector<64x4xf32>, vector<4x512xf32>, vector<64x512xf32> -> vector<64x512xf32>
    %c0_4 = arith.constant 0 : index
    %c0_5 = arith.constant 0 : index
    %4 = vector.load %arg4[%c0_4, %c0_5] : memref<1x512xf32, #tpu.memory_space<vmem>>, vector<1x512xf32>
    %5 = vector.broadcast %4 : vector<1x512xf32> to vector<64x512xf32>
    %6 = arith.addf %3, %5 : vector<64x512xf32>
    %c0_6 = arith.constant 0 : index
    %c0_7 = arith.constant 0 : index
    %7 = vector.load %arg8[%c0_6, %c0_7] : memref<64x512xf32, #tpu.memory_space<vmem>>, vector<64x512xf32>
    tpu.vector_store %arg8[%c0_6, %c0_7], %6 {strides = array<i32>} : memref<64x512xf32, #tpu.memory_space<vmem>>, vector<64x512xf32>,
    %c0_8 = arith.constant 0 : index
    %c0_9 = arith.constant 0 : index
    %8 = vector.load %arg3[%c0_8, %c0_9] : memref<128x512xf32, #tpu.memory_space<vmem>>, vector<128x512xf32>
    %9 = tpu.iota {dimensions = array<i32: 1>} : vector<8x512xi32>
    %c256_i32 = arith.constant 256 : i32
    %10 = vector.broadcast %c256_i32 : i32 to vector<8x512xi32>
    %11 = arith.cmpi sge, %9, %10 : vector<8x512xi32>
    %c384_i32 = arith.constant 384 : i32
    %12 = vector.broadcast %c384_i32 : i32 to vector<8x512xi32>
    %13 = arith.cmpi slt, %9, %12 : vector<8x512xi32>
    %14 = arith.andi %11, %13 : vector<8x512xi1>
    %cst_10 = arith.constant 0.000000e+00 : f32
    %15 = vector.broadcast %cst_10 : f32 to vector<8x128xf32>
    %cst_11 = arith.constant 0.000000e+00 : f32
    %16 = vector.broadcast %cst_11 : f32 to vector<8x128xf32>
    %c0_12 = arith.constant 0 : index
    %c0_13 = arith.constant 0 : index
    %17 = vector.load %arg8[%c0_12, %c0_13] : memref<64x512xf32, #tpu.memory_space<vmem>>, vector<8x512xf32>
    %cst_14 = arith.constant dense<0.000000e+00> : vector<8x512xf32>
    %18 = tpu.matmul %15, %8, %cst_14 {dimension_numbers = #tpu.dot_dimension_numbers<[1], [0], [0], [1], [0, 0, 1, 1], [], []>} : vector<8x128xf32>, vector<128x512xf32>, vector<8x512xf32> -> vector<8x512xf32>
    %19 = arith.addf %17, %18 : vector<8x512xf32>
    %cst_15 = arith.constant 2.000000e+00 : f32
    %20 = vector.broadcast %cst_15 : f32 to vector<8x512xf32>
    %21 = arith.mulf %20, %19 : vector<8x512xf32>
    %22 = arith.select %14, %21, %19 : vector<8x512xi1>, vector<8x512xf32>
    %23 = arith.negf %22 : vector<8x512xf32>
    %24 = math.exp %23 : vector<8x512xf32>
    %cst_16 = arith.constant 1.000000e+00 : f32
    %25 = vector.broadcast %cst_16 : f32 to vector<8x512xf32>
    %26 = arith.addf %25, %24 : vector<8x512xf32>
    %27 = arith.divf %25, %26 : vector<8x512xf32>
    %cst_17 = arith.constant 2.000000e+00 : f32
    %28 = vector.broadcast %cst_17 : f32 to vector<8x512xf32>
    %29 = arith.mulf %28, %27 : vector<8x512xf32>
    %cst_18 = arith.constant 1.000000e+00 : f32
    %30 = vector.broadcast %cst_18 : f32 to vector<8x512xf32>
    %31 = arith.subf %29, %30 : vector<8x512xf32>
    %32 = arith.select %14, %31, %27 : vector<8x512xi1>, vector<8x512xf32>
    %33 = vector.extract_strided_slice %32 {offsets = [0, 0], sizes = [8, 128], strides = [1, 1]} : vector<8x512xf32> to vector<8x128xf32>
    %34 = vector.extract_strided_slice %32 {offsets = [0, 128], sizes = [8, 128], strides = [1, 1]} : vector<8x512xf32> to vector<8x128xf32>
    %35 = vector.extract_strided_slice %32 {offsets = [0, 256], sizes = [8, 128], strides = [1, 1]} : vector<8x512xf32> to vector<8x128xf32>
    %36 = vector.extract_strided_slice %32 {offsets = [0, 384], sizes = [8, 128], strides = [1, 1]} : vector<8x512xf32> to vector<8x128xf32>
    %37 = arith.mulf %34, %16 : vector<8x128xf32>
    %38 = arith.mulf %33, %35 : vector<8x128xf32>
    %39 = arith.addf %37, %38 : vector<8x128xf32>
    %40 = math.tanh %39 : vector<8x128xf32>
    %41 = arith.mulf %36, %40 : vector<8x128xf32>
    %c0_19 = arith.constant 0 : index
    %c0_20 = arith.constant 0 : index
    %42 = vector.load %arg9[%c0_19, %c0_20] : memref<64x128xf32, #tpu.memory_space<vmem>>, vector<8x128xf32>
    tpu.vector_store %arg9[%c0_19, %c0_20], %41 {strides = array<i32>} : memref<64x128xf32, #tpu.memory_space<vmem>>, vector<8x128xf32>,
    %c8 = arith.constant 8 : index
    %c0_21 = arith.constant 0 : index
    %43 = vector.load %arg8[%c8, %c0_21] : memref<64x512xf32, #tpu.memory_space<vmem>>, vector<8x512xf32>
    %cst_22 = arith.constant dense<0.000000e+00> : vector<8x512xf32>
    %44 = tpu.matmul %41, %8, %cst_22 {dimension_numbers = #tpu.dot_dimension_numbers<[1], [0], [0], [1], [0, 0, 1, 1], [], []>} : vector<8x128xf32>, vector<128x512xf32>, vector<8x512xf32> -> vector<8x512xf32>
    %45 = arith.addf %43, %44 : vector<8x512xf32>
    %cst_23 = arith.constant 2.000000e+00 : f32
    %46 = vector.broadcast %cst_23 : f32 to vector<8x512xf32>
    %47 = arith.mulf %46, %45 : vector<8x512xf32>
    %48 = arith.select %14, %47, %45 : vector<8x512xi1>, vector<8x512xf32>
    %49 = arith.negf %48 : vector<8x512xf32>
    %50 = math.exp %49 : vector<8x512xf32>
    %cst_24 = arith.constant 1.000000e+00 : f32
    %51 = vector.broadcast %cst_24 : f32 to vector<8x512xf32>
    %52 = arith.addf %51, %50 : vector<8x512xf32>
    %53 = arith.divf %51, %52 : vector<8x512xf32>
    %cst_25 = arith.constant 2.000000e+00 : f32
    %54 = vector.broadcast %cst_25 : f32 to vector<8x512xf32>
    %55 = arith.mulf %54, %53 : vector<8x512xf32>
    %cst_26 = arith.constant 1.000000e+00 : f32
    %56 = vector.broadcast %cst_26 : f32 to vector<8x512xf32>
    %57 = arith.subf %55, %56 : vector<8x512xf32>
    %58 = arith.select %14, %57, %53 : vector<8x512xi1>, vector<8x512xf32>
    %59 = vector.extract_strided_slice %58 {offsets = [0, 0], sizes = [8, 128], strides = [1, 1]} : vector<8x512xf32> to vector<8x128xf32>
    %60 = vector.extract_strided_slice %58 {offsets = [0, 128], sizes = [8, 128], strides = [1, 1]} : vector<8x512xf32> to vector<8x128xf32>
    %61 = vector.extract_strided_slice %58 {offsets = [0, 256], sizes = [8, 128], strides = [1, 1]} : vector<8x512xf32> to vector<8x128xf32>
    %62 = vector.extract_strided_slice %58 {offsets = [0, 384], sizes = [8, 128], strides = [1, 1]} : vector<8x512xf32> to vector<8x128xf32>
    %63 = arith.mulf %60, %39 : vector<8x128xf32>
    %64 = arith.mulf %59, %61 : vector<8x128xf32>
    %65 = arith.addf %63, %64 : vector<8x128xf32>
    %66 = math.tanh %65 : vector<8x128xf32>
    %67 = arith.mulf %62, %66 : vector<8x128xf32>
    %c8_27 = arith.constant 8 : index
    %c0_28 = arith.constant 0 : index
    %68 = vector.load %arg9[%c8_27, %c0_28] : memref<64x128xf32, #tpu.memory_space<vmem>>, vector<8x128xf32>
    tpu.vector_store %arg9[%c8_27, %c0_28], %67 {strides = array<i32>} : memref<64x128xf32, #tpu.memory_space<vmem>>, vector<8x128xf32>,
    %c16 = arith.constant 16 : index
    %c0_29 = arith.constant 0 : index
    %69 = vector.load %arg8[%c16, %c0_29] : memref<64x512xf32, #tpu.memory_space<vmem>>, vector<8x512xf32>
    %cst_30 = arith.constant dense<0.000000e+00> : vector<8x512xf32>
    %70 = tpu.matmul %67, %8, %cst_30 {dimension_numbers = #tpu.dot_dimension_numbers<[1], [0], [0], [1], [0, 0, 1, 1], [], []>} : vector<8x128xf32>, vector<128x512xf32>, vector<8x512xf32> -> vector<8x512xf32>
    %71 = arith.addf %69, %70 : vector<8x512xf32>
    %cst_31 = arith.constant 2.000000e+00 : f32
    %72 = vector.broadcast %cst_31 : f32 to vector<8x512xf32>
    %73 = arith.mulf %72, %71 : vector<8x512xf32>
    %74 = arith.select %14, %73, %71 : vector<8x512xi1>, vector<8x512xf32>
    %75 = arith.negf %74 : vector<8x512xf32>
    %76 = math.exp %75 : vector<8x512xf32>
    %cst_32 = arith.constant 1.000000e+00 : f32
    %77 = vector.broadcast %cst_32 : f32 to vector<8x512xf32>
    %78 = arith.addf %77, %76 : vector<8x512xf32>
    %79 = arith.divf %77, %78 : vector<8x512xf32>
    %cst_33 = arith.constant 2.000000e+00 : f32
    %80 = vector.broadcast %cst_33 : f32 to vector<8x512xf32>
    %81 = arith.mulf %80, %79 : vector<8x512xf32>
    %cst_34 = arith.constant 1.000000e+00 : f32
    %82 = vector.broadcast %cst_34 : f32 to vector<8x512xf32>
    %83 = arith.subf %81, %82 : vector<8x512xf32>
    %84 = arith.select %14, %83, %79 : vector<8x512xi1>, vector<8x512xf32>
    %85 = vector.extract_strided_slice %84 {offsets = [0, 0], sizes = [8, 128], strides = [1, 1]} : vector<8x512xf32> to vector<8x128xf32>
    %86 = vector.extract_strided_slice %84 {offsets = [0, 128], sizes = [8, 128], strides = [1, 1]} : vector<8x512xf32> to vector<8x128xf32>
    %87 = vector.extract_strided_slice %84 {offsets = [0, 256], sizes = [8, 128], strides = [1, 1]} : vector<8x512xf32> to vector<8x128xf32>
    %88 = vector.extract_strided_slice %84 {offsets = [0, 384], sizes = [8, 128], strides = [1, 1]} : vector<8x512xf32> to vector<8x128xf32>
    %89 = arith.mulf %86, %65 : vector<8x128xf32>
    %90 = arith.mulf %85, %87 : vector<8x128xf32>
    %91 = arith.addf %89, %90 : vector<8x128xf32>
    %92 = math.tanh %91 : vector<8x128xf32>
    %93 = arith.mulf %88, %92 : vector<8x128xf32>
    %c16_35 = arith.constant 16 : index
    %c0_36 = arith.constant 0 : index
    %94 = vector.load %arg9[%c16_35, %c0_36] : memref<64x128xf32, #tpu.memory_space<vmem>>, vector<8x128xf32>
    tpu.vector_store %arg9[%c16_35, %c0_36], %93 {strides = array<i32>} : memref<64x128xf32, #tpu.memory_space<vmem>>, vector<8x128xf32>,
    %c24 = arith.constant 24 : index
    %c0_37 = arith.constant 0 : index
    %95 = vector.load %arg8[%c24, %c0_37] : memref<64x512xf32, #tpu.memory_space<vmem>>, vector<8x512xf32>
    %cst_38 = arith.constant dense<0.000000e+00> : vector<8x512xf32>
    %96 = tpu.matmul %93, %8, %cst_38 {dimension_numbers = #tpu.dot_dimension_numbers<[1], [0], [0], [1], [0, 0, 1, 1], [], []>} : vector<8x128xf32>, vector<128x512xf32>, vector<8x512xf32> -> vector<8x512xf32>
    %97 = arith.addf %95, %96 : vector<8x512xf32>
    %cst_39 = arith.constant 2.000000e+00 : f32
    %98 = vector.broadcast %cst_39 : f32 to vector<8x512xf32>
    %99 = arith.mulf %98, %97 : vector<8x512xf32>
    %100 = arith.select %14, %99, %97 : vector<8x512xi1>, vector<8x512xf32>
    %101 = arith.negf %100 : vector<8x512xf32>
    %102 = math.exp %101 : vector<8x512xf32>
    %cst_40 = arith.constant 1.000000e+00 : f32
    %103 = vector.broadcast %cst_40 : f32 to vector<8x512xf32>
    %104 = arith.addf %103, %102 : vector<8x512xf32>
    %105 = arith.divf %103, %104 : vector<8x512xf32>
    %cst_41 = arith.constant 2.000000e+00 : f32
    %106 = vector.broadcast %cst_41 : f32 to vector<8x512xf32>
    %107 = arith.mulf %106, %105 : vector<8x512xf32>
    %cst_42 = arith.constant 1.000000e+00 : f32
    %108 = vector.broadcast %cst_42 : f32 to vector<8x512xf32>
    %109 = arith.subf %107, %108 : vector<8x512xf32>
    %110 = arith.select %14, %109, %105 : vector<8x512xi1>, vector<8x512xf32>
    %111 = vector.extract_strided_slice %110 {offsets = [0, 0], sizes = [8, 128], strides = [1, 1]} : vector<8x512xf32> to vector<8x128xf32>
    %112 = vector.extract_strided_slice %110 {offsets = [0, 128], sizes = [8, 128], strides = [1, 1]} : vector<8x512xf32> to vector<8x128xf32>
    %113 = vector.extract_strided_slice %110 {offsets = [0, 256], sizes = [8, 128], strides = [1, 1]} : vector<8x512xf32> to vector<8x128xf32>
    %114 = vector.extract_strided_slice %110 {offsets = [0, 384], sizes = [8, 128], strides = [1, 1]} : vector<8x512xf32> to vector<8x128xf32>
    %115 = arith.mulf %112, %91 : vector<8x128xf32>
    %116 = arith.mulf %111, %113 : vector<8x128xf32>
    %117 = arith.addf %115, %116 : vector<8x128xf32>
    %118 = math.tanh %117 : vector<8x128xf32>
    %119 = arith.mulf %114, %118 : vector<8x128xf32>
    %c24_43 = arith.constant 24 : index
    %c0_44 = arith.constant 0 : index
    %120 = vector.load %arg9[%c24_43, %c0_44] : memref<64x128xf32, #tpu.memory_space<vmem>>, vector<8x128xf32>
    tpu.vector_store %arg9[%c24_43, %c0_44], %119 {strides = array<i32>} : memref<64x128xf32, #tpu.memory_space<vmem>>, vector<8x128xf32>,
    %c32 = arith.constant 32 : index
    %c0_45 = arith.constant 0 : index
    %121 = vector.load %arg8[%c32, %c0_45] : memref<64x512xf32, #tpu.memory_space<vmem>>, vector<8x512xf32>
    %cst_46 = arith.constant dense<0.000000e+00> : vector<8x512xf32>
    %122 = tpu.matmul %119, %8, %cst_46 {dimension_numbers = #tpu.dot_dimension_numbers<[1], [0], [0], [1], [0, 0, 1, 1], [], []>} : vector<8x128xf32>, vector<128x512xf32>, vector<8x512xf32> -> vector<8x512xf32>
    %123 = arith.addf %121, %122 : vector<8x512xf32>
    %cst_47 = arith.constant 2.000000e+00 : f32
    %124 = vector.broadcast %cst_47 : f32 to vector<8x512xf32>
    %125 = arith.mulf %124, %123 : vector<8x512xf32>
    %126 = arith.select %14, %125, %123 : vector<8x512xi1>, vector<8x512xf32>
    %127 = arith.negf %126 : vector<8x512xf32>
    %128 = math.exp %127 : vector<8x512xf32>
    %cst_48 = arith.constant 1.000000e+00 : f32
    %129 = vector.broadcast %cst_48 : f32 to vector<8x512xf32>
    %130 = arith.addf %129, %128 : vector<8x512xf32>
    %131 = arith.divf %129, %130 : vector<8x512xf32>
    %cst_49 = arith.constant 2.000000e+00 : f32
    %132 = vector.broadcast %cst_49 : f32 to vector<8x512xf32>
    %133 = arith.mulf %132, %131 : vector<8x512xf32>
    %cst_50 = arith.constant 1.000000e+00 : f32
    %134 = vector.broadcast %cst_50 : f32 to vector<8x512xf32>
    %135 = arith.subf %133, %134 : vector<8x512xf32>
    %136 = arith.select %14, %135, %131 : vector<8x512xi1>, vector<8x512xf32>
    %137 = vector.extract_strided_slice %136 {offsets = [0, 0], sizes = [8, 128], strides = [1, 1]} : vector<8x512xf32> to vector<8x128xf32>
    %138 = vector.extract_strided_slice %136 {offsets = [0, 128], sizes = [8, 128], strides = [1, 1]} : vector<8x512xf32> to vector<8x128xf32>
    %139 = vector.extract_strided_slice %136 {offsets = [0, 256], sizes = [8, 128], strides = [1, 1]} : vector<8x512xf32> to vector<8x128xf32>
    %140 = vector.extract_strided_slice %136 {offsets = [0, 384], sizes = [8, 128], strides = [1, 1]} : vector<8x512xf32> to vector<8x128xf32>
    %141 = arith.mulf %138, %117 : vector<8x128xf32>
    %142 = arith.mulf %137, %139 : vector<8x128xf32>
    %143 = arith.addf %141, %142 : vector<8x128xf32>
    %144 = math.tanh %143 : vector<8x128xf32>
    %145 = arith.mulf %140, %144 : vector<8x128xf32>
    %c32_51 = arith.constant 32 : index
    %c0_52 = arith.constant 0 : index
    %146 = vector.load %arg9[%c32_51, %c0_52] : memref<64x128xf32, #tpu.memory_space<vmem>>, vector<8x128xf32>
    tpu.vector_store %arg9[%c32_51, %c0_52], %145 {strides = array<i32>} : memref<64x128xf32, #tpu.memory_space<vmem>>, vector<8x128xf32>,
    %c40 = arith.constant 40 : index
    %c0_53 = arith.constant 0 : index
    %147 = vector.load %arg8[%c40, %c0_53] : memref<64x512xf32, #tpu.memory_space<vmem>>, vector<8x512xf32>
    %cst_54 = arith.constant dense<0.000000e+00> : vector<8x512xf32>
    %148 = tpu.matmul %145, %8, %cst_54 {dimension_numbers = #tpu.dot_dimension_numbers<[1], [0], [0], [1], [0, 0, 1, 1], [], []>} : vector<8x128xf32>, vector<128x512xf32>, vector<8x512xf32> -> vector<8x512xf32>
    %149 = arith.addf %147, %148 : vector<8x512xf32>
    %cst_55 = arith.constant 2.000000e+00 : f32
    %150 = vector.broadcast %cst_55 : f32 to vector<8x512xf32>
    %151 = arith.mulf %150, %149 : vector<8x512xf32>
    %152 = arith.select %14, %151, %149 : vector<8x512xi1>, vector<8x512xf32>
    %153 = arith.negf %152 : vector<8x512xf32>
    %154 = math.exp %153 : vector<8x512xf32>
    %cst_56 = arith.constant 1.000000e+00 : f32
    %155 = vector.broadcast %cst_56 : f32 to vector<8x512xf32>
    %156 = arith.addf %155, %154 : vector<8x512xf32>
    %157 = arith.divf %155, %156 : vector<8x512xf32>
    %cst_57 = arith.constant 2.000000e+00 : f32
    %158 = vector.broadcast %cst_57 : f32 to vector<8x512xf32>
    %159 = arith.mulf %158, %157 : vector<8x512xf32>
    %cst_58 = arith.constant 1.000000e+00 : f32
    %160 = vector.broadcast %cst_58 : f32 to vector<8x512xf32>
    %161 = arith.subf %159, %160 : vector<8x512xf32>
    %162 = arith.select %14, %161, %157 : vector<8x512xi1>, vector<8x512xf32>
    %163 = vector.extract_strided_slice %162 {offsets = [0, 0], sizes = [8, 128], strides = [1, 1]} : vector<8x512xf32> to vector<8x128xf32>
    %164 = vector.extract_strided_slice %162 {offsets = [0, 128], sizes = [8, 128], strides = [1, 1]} : vector<8x512xf32> to vector<8x128xf32>
    %165 = vector.extract_strided_slice %162 {offsets = [0, 256], sizes = [8, 128], strides = [1, 1]} : vector<8x512xf32> to vector<8x128xf32>
    %166 = vector.extract_strided_slice %162 {offsets = [0, 384], sizes = [8, 128], strides = [1, 1]} : vector<8x512xf32> to vector<8x128xf32>
    %167 = arith.mulf %164, %143 : vector<8x128xf32>
    %168 = arith.mulf %163, %165 : vector<8x128xf32>
    %169 = arith.addf %167, %168 : vector<8x128xf32>
    %170 = math.tanh %169 : vector<8x128xf32>
    %171 = arith.mulf %166, %170 : vector<8x128xf32>
    %c40_59 = arith.constant 40 : index
    %c0_60 = arith.constant 0 : index
    %172 = vector.load %arg9[%c40_59, %c0_60] : memref<64x128xf32, #tpu.memory_space<vmem>>, vector<8x128xf32>
    tpu.vector_store %arg9[%c40_59, %c0_60], %171 {strides = array<i32>} : memref<64x128xf32, #tpu.memory_space<vmem>>, vector<8x128xf32>,
    %c48 = arith.constant 48 : index
    %c0_61 = arith.constant 0 : index
    %173 = vector.load %arg8[%c48, %c0_61] : memref<64x512xf32, #tpu.memory_space<vmem>>, vector<8x512xf32>
    %cst_62 = arith.constant dense<0.000000e+00> : vector<8x512xf32>
    %174 = tpu.matmul %171, %8, %cst_62 {dimension_numbers = #tpu.dot_dimension_numbers<[1], [0], [0], [1], [0, 0, 1, 1], [], []>} : vector<8x128xf32>, vector<128x512xf32>, vector<8x512xf32> -> vector<8x512xf32>
    %175 = arith.addf %173, %174 : vector<8x512xf32>
    %cst_63 = arith.constant 2.000000e+00 : f32
    %176 = vector.broadcast %cst_63 : f32 to vector<8x512xf32>
    %177 = arith.mulf %176, %175 : vector<8x512xf32>
    %178 = arith.select %14, %177, %175 : vector<8x512xi1>, vector<8x512xf32>
    %179 = arith.negf %178 : vector<8x512xf32>
    %180 = math.exp %179 : vector<8x512xf32>
    %cst_64 = arith.constant 1.000000e+00 : f32
    %181 = vector.broadcast %cst_64 : f32 to vector<8x512xf32>
    %182 = arith.addf %181, %180 : vector<8x512xf32>
    %183 = arith.divf %181, %182 : vector<8x512xf32>
    %cst_65 = arith.constant 2.000000e+00 : f32
    %184 = vector.broadcast %cst_65 : f32 to vector<8x512xf32>
    %185 = arith.mulf %184, %183 : vector<8x512xf32>
    %cst_66 = arith.constant 1.000000e+00 : f32
    %186 = vector.broadcast %cst_66 : f32 to vector<8x512xf32>
    %187 = arith.subf %185, %186 : vector<8x512xf32>
    %188 = arith.select %14, %187, %183 : vector<8x512xi1>, vector<8x512xf32>
    %189 = vector.extract_strided_slice %188 {offsets = [0, 0], sizes = [8, 128], strides = [1, 1]} : vector<8x512xf32> to vector<8x128xf32>
    %190 = vector.extract_strided_slice %188 {offsets = [0, 128], sizes = [8, 128], strides = [1, 1]} : vector<8x512xf32> to vector<8x128xf32>
    %191 = vector.extract_strided_slice %188 {offsets = [0, 256], sizes = [8, 128], strides = [1, 1]} : vector<8x512xf32> to vector<8x128xf32>
    %192 = vector.extract_strided_slice %188 {offsets = [0, 384], sizes = [8, 128], strides = [1, 1]} : vector<8x512xf32> to vector<8x128xf32>
    %193 = arith.mulf %190, %169 : vector<8x128xf32>
    %194 = arith.mulf %189, %191 : vector<8x128xf32>
    %195 = arith.addf %193, %194 : vector<8x128xf32>
    %196 = math.tanh %195 : vector<8x128xf32>
    %197 = arith.mulf %192, %196 : vector<8x128xf32>
    %c48_67 = arith.constant 48 : index
    %c0_68 = arith.constant 0 : index
    %198 = vector.load %arg9[%c48_67, %c0_68] : memref<64x128xf32, #tpu.memory_space<vmem>>, vector<8x128xf32>
    tpu.vector_store %arg9[%c48_67, %c0_68], %197 {strides = array<i32>} : memref<64x128xf32, #tpu.memory_space<vmem>>, vector<8x128xf32>,
    %c56 = arith.constant 56 : index
    %c0_69 = arith.constant 0 : index
    %199 = vector.load %arg8[%c56, %c0_69] : memref<64x512xf32, #tpu.memory_space<vmem>>, vector<8x512xf32>
    %cst_70 = arith.constant dense<0.000000e+00> : vector<8x512xf32>
    %200 = tpu.matmul %197, %8, %cst_70 {dimension_numbers = #tpu.dot_dimension_numbers<[1], [0], [0], [1], [0, 0, 1, 1], [], []>} : vector<8x128xf32>, vector<128x512xf32>, vector<8x512xf32> -> vector<8x512xf32>
    %201 = arith.addf %199, %200 : vector<8x512xf32>
    %cst_71 = arith.constant 2.000000e+00 : f32
    %202 = vector.broadcast %cst_71 : f32 to vector<8x512xf32>
    %203 = arith.mulf %202, %201 : vector<8x512xf32>
    %204 = arith.select %14, %203, %201 : vector<8x512xi1>, vector<8x512xf32>
    %205 = arith.negf %204 : vector<8x512xf32>
    %206 = math.exp %205 : vector<8x512xf32>
    %cst_72 = arith.constant 1.000000e+00 : f32
    %207 = vector.broadcast %cst_72 : f32 to vector<8x512xf32>
    %208 = arith.addf %207, %206 : vector<8x512xf32>
    %209 = arith.divf %207, %208 : vector<8x512xf32>
    %cst_73 = arith.constant 2.000000e+00 : f32
    %210 = vector.broadcast %cst_73 : f32 to vector<8x512xf32>
    %211 = arith.mulf %210, %209 : vector<8x512xf32>
    %cst_74 = arith.constant 1.000000e+00 : f32
    %212 = vector.broadcast %cst_74 : f32 to vector<8x512xf32>
    %213 = arith.subf %211, %212 : vector<8x512xf32>
    %214 = arith.select %14, %213, %209 : vector<8x512xi1>, vector<8x512xf32>
    %215 = vector.extract_strided_slice %214 {offsets = [0, 0], sizes = [8, 128], strides = [1, 1]} : vector<8x512xf32> to vector<8x128xf32>
    %216 = vector.extract_strided_slice %214 {offsets = [0, 128], sizes = [8, 128], strides = [1, 1]} : vector<8x512xf32> to vector<8x128xf32>
    %217 = vector.extract_strided_slice %214 {offsets = [0, 256], sizes = [8, 128], strides = [1, 1]} : vector<8x512xf32> to vector<8x128xf32>
    %218 = vector.extract_strided_slice %214 {offsets = [0, 384], sizes = [8, 128], strides = [1, 1]} : vector<8x512xf32> to vector<8x128xf32>
    %219 = arith.mulf %216, %195 : vector<8x128xf32>
    %220 = arith.mulf %215, %217 : vector<8x128xf32>
    %221 = arith.addf %219, %220 : vector<8x128xf32>
    %222 = math.tanh %221 : vector<8x128xf32>
    %223 = arith.mulf %218, %222 : vector<8x128xf32>
    %c56_75 = arith.constant 56 : index
    %c0_76 = arith.constant 0 : index
    %224 = vector.load %arg9[%c56_75, %c0_76] : memref<64x128xf32, #tpu.memory_space<vmem>>, vector<8x128xf32>
    tpu.vector_store %arg9[%c56_75, %c0_76], %223 {strides = array<i32>} : memref<64x128xf32, #tpu.memory_space<vmem>>, vector<8x128xf32>,
    %c0_77 = arith.constant 0 : index
    %c0_78 = arith.constant 0 : index
    %225 = vector.load %arg9[%c0_77, %c0_78] : memref<64x128xf32, #tpu.memory_space<vmem>>, vector<64x128xf32>
    %c0_79 = arith.constant 0 : index
    %c0_80 = arith.constant 0 : index
    %226 = vector.load %arg5[%c0_79, %c0_80] : memref<128x128xf32, #tpu.memory_space<vmem>>, vector<128x128xf32>
    %cst_81 = arith.constant dense<0.000000e+00> : vector<64x128xf32>
    %227 = tpu.matmul %225, %226, %cst_81 {dimension_numbers = #tpu.dot_dimension_numbers<[1], [0], [0], [1], [0, 0, 1, 1], [], []>} : vector<64x128xf32>, vector<128x128xf32>, vector<64x128xf32> -> vector<64x128xf32>
    %c0_82 = arith.constant 0 : index
    %c0_83 = arith.constant 0 : index
    %228 = vector.load %arg6[%c0_82, %c0_83] : memref<1x128xf32, #tpu.memory_space<vmem>>, vector<1x128xf32>
    %229 = vector.broadcast %228 : vector<1x128xf32> to vector<64x128xf32>
    %230 = arith.addf %227, %229 : vector<64x128xf32>
    %231 = vector.shape_cast %230 : vector<64x128xf32> to vector<8x8x128xf32>
    %232 = vector.shape_cast %223 : vector<8x128xf32> to vector<1x8x128xf32>
    %233 = vector.broadcast %232 : vector<1x8x128xf32> to vector<8x8x128xf32>
    %234 = arith.mulf %231, %233 : vector<8x8x128xf32>
    %cst_84 = arith.constant dense<0.000000e+00> : vector<8x8xf32>
    %235 = vector.multi_reduction <add>, %234, %cst_84 [2] : vector<8x8x128xf32> to vector<8x8xf32>
    %236 = vector.shape_cast %235 : vector<8x8xf32> to vector<8x8x1xf32>
    %cst_85 = arith.constant dense<0xFF800000> : vector<8x1xf32>
    %237 = vector.multi_reduction <maximumf>, %236, %cst_85 [0] : vector<8x8x1xf32> to vector<8x1xf32>
    %238 = vector.shape_cast %237 : vector<8x1xf32> to vector<1x8x1xf32>
    %239 = vector.broadcast %238 : vector<1x8x1xf32> to vector<8x8x1xf32>
    %240 = arith.subf %236, %239 : vector<8x8x1xf32>
    %241 = math.exp %240 : vector<8x8x1xf32>
    %cst_86 = arith.constant dense<0.000000e+00> : vector<8x1xf32>
    %242 = vector.multi_reduction <add>, %241, %cst_86 [0] : vector<8x8x1xf32> to vector<8x1xf32>
    %243 = vector.shape_cast %242 : vector<8x1xf32> to vector<1x8x1xf32>
    %244 = tpu.reciprocal %243 : vector<1x8x1xf32> -> vector<1x8x1xf32>
    %245 = vector.broadcast %244 : vector<1x8x1xf32> to vector<8x8x1xf32>
    %246 = arith.mulf %241, %245 : vector<8x8x1xf32>
    %247 = vector.broadcast %246 : vector<8x8x1xf32> to vector<8x8x128xf32>
    %248 = arith.mulf %231, %247 : vector<8x8x128xf32>
    %cst_87 = arith.constant dense<0.000000e+00> : vector<8x128xf32>
    %249 = vector.multi_reduction <add>, %248, %cst_87 [0] : vector<8x8x128xf32> to vector<8x128xf32>
    %c0_88 = arith.constant 0 : index
    %c0_89 = arith.constant 0 : index
    %c0_90 = arith.constant 0 : index
    %250 = vector.load %arg7[%c0_88, %c0_89, %c0_90] : memref<1x8x128xf32, #tpu.memory_space<vmem>>, vector<1x8x128xf32>
    %251 = vector.shape_cast %250 : vector<1x8x128xf32> to vector<8x128xf32>
    %252 = vector.shape_cast %249 : vector<8x128xf32> to vector<1x8x128xf32>
    tpu.vector_store %arg7[%c0_88, %c0_89, %c0_90], %252 {strides = array<i32>} : memref<1x8x128xf32, #tpu.memory_space<vmem>>, vector<1x8x128xf32>,
    return
  }
  func.func @transform_0(%arg0: i32) -> (i32, i32, i32) {
    %c0_i32 = arith.constant 0 : i32
    %c0_i32_0 = arith.constant 0 : i32
    %c0_i32_1 = arith.constant 0 : i32
    return %arg0, %c0_i32, %c0_i32_0 : i32, i32, i32
  }
  func.func @transform_1(%arg0: i32) -> (i32, i32) {
    %c0_i32 = arith.constant 0 : i32
    %c0_i32_0 = arith.constant 0 : i32
    %c0_i32_1 = arith.constant 0 : i32
    return %c0_i32, %c0_i32_0 : i32, i32
  }
  func.func @transform_2(%arg0: i32) -> (i32, i32) {
    %c0_i32 = arith.constant 0 : i32
    %c0_i32_0 = arith.constant 0 : i32
    %c0_i32_1 = arith.constant 0 : i32
    return %c0_i32, %c0_i32_0 : i32, i32
  }
  func.func @transform_3(%arg0: i32) -> (i32, i32) {
    %c0_i32 = arith.constant 0 : i32
    %c0_i32_0 = arith.constant 0 : i32
    %c0_i32_1 = arith.constant 0 : i32
    return %c0_i32, %c0_i32_0 : i32, i32
  }
  func.func @transform_4(%arg0: i32) -> (i32, i32) {
    %c0_i32 = arith.constant 0 : i32
    %c0_i32_0 = arith.constant 0 : i32
    %c0_i32_1 = arith.constant 0 : i32
    return %c0_i32, %c0_i32_0 : i32, i32
  }
  func.func @transform_5(%arg0: i32) -> (i32, i32) {
    %c0_i32 = arith.constant 0 : i32
    %c0_i32_0 = arith.constant 0 : i32
    %c0_i32_1 = arith.constant 0 : i32
    return %c0_i32, %c0_i32_0 : i32, i32
  }
  func.func @transform_6(%arg0: i32) -> (i32, i32, i32) {
    %c0_i32 = arith.constant 0 : i32
    %c0_i32_0 = arith.constant 0 : i32
    %c0_i32_1 = arith.constant 0 : i32
    return %arg0, %c0_i32, %c0_i32_0 : i32, i32, i32
  }
}

</mosaic_0001>

<llo_original>
// kernel: tpu_custom_call.1
$region0: #{tpu_custom_call.1}
  #allocation0 [shape = 'u32[]', space=smem, size = 0x4, offset = 0x4, fixed_abs, tag = 'smem constant byte address 0x4 - core index']
  #allocation1 [shape = 'u32[144,128]{1,0:T(1,128)}', space=vmem, size = 0x12000, scoped, tag = 'internal scratch']
  #allocation2 [shape = 'f32[64,512]{1,0:T(8,128)}', space=vmem, size = 0x20000, scoped, tag = 'scratch operand']
  #allocation3 [shape = 'f32[64,128]{1,0:T(8,128)}', space=vmem, size = 0x8000, scoped, tag = 'scratch operand']
  %s0 = inlined_call_operand.vmem [shape: f32[1,64,4], index: 0, kind: input, shape index: {}]
  %s1 = inlined_call_operand.vmem [shape: f32[4,512], index: 1, kind: input, shape index: {}]
  %s2 = inlined_call_operand.hbm [shape: f32[128,512], index: 2, kind: input, shape index: {}]
  %s3 = inlined_call_operand.vmem [shape: f32[1,512], index: 3, kind: input, shape index: {}]
  %s4 = inlined_call_operand.hbm [shape: f32[128,128], index: 4, kind: input, shape index: {}]
  %s5 = inlined_call_operand.vmem [shape: f32[1,128], index: 5, kind: input, shape index: {}]
  %s6 = inlined_call_operand.hbm [shape: f32[1,8,128], index: 6, kind: output, shape index: {}]
  %s7 = sld [smem:[#allocation0]]
  $region42: #{tpu_custom_call.1} parent=0
    _
  %s9 = ssub.s32 1, %s7
  %s10 = scalar_select 0, %s9, %s7
  $region1: #{tpu_custom_call.1} parent=0
    #allocation4 [shape = 'u8[262144]{0}', space=vmem, size = 0x40000, scoped, tag = 'input window, operand 2, single buffered']
    #allocation5 [shape = 's32[1]{0}', space=sflag, size = 0x4, scoped, tag = 'scoped memory for tpu_custom_call.1']
    #allocation6 [shape = 's32[1]{0}', space=sflag, size = 0x4, scoped, tag = 'scoped memory for tpu_custom_call.1']
    #allocation7 [shape = 'u8[65536]{0}', space=vmem, size = 0x10000, scoped, tag = 'input window, operand 4, single buffered']
    #allocation8 [shape = 's32[1]{0}', space=sflag, size = 0x4, scoped, tag = 'scoped memory for tpu_custom_call.1']
    #allocation9 [shape = 'u8[4096]{0}', space=vmem, size = 0x1000, scoped, tag = 'output window, operand 0, single buffered']
    %11 = vsyncpa [#allocation5], 0
    %12 = vsyncpa [#allocation8], 0
    %13 = vsyncpa [#allocation6], 0
    // Predicated region
    $region2: #{tpu_custom_call.1} parent=1 // pred_check
      _
    $region3: #{tpu_custom_call.1} parent=1 // pred_check_branch
      %15 = sbr.rel (0) target = $region5
    $region4: #{tpu_custom_call.1} parent=1 // pred_region
      _
    $region5: #{tpu_custom_call.1} parent=1 // pred_fallthru
      _
    // Predicated region
    $region6: #{tpu_custom_call.1} parent=1 // pred_check
      _
    $region7: #{tpu_custom_call.1} parent=1 // pred_check_branch
      %17 = sbr.rel (0) target = $region9
    $region8: #{tpu_custom_call.1} parent=1 // pred_region
      _
    $region9: #{tpu_custom_call.1} parent=1 // pred_fallthru
      _
    // Predicated region
    $region10: #{tpu_custom_call.1} parent=1 // pred_check
      _
    $region11: #{tpu_custom_call.1} parent=1 // pred_check_branch
      %19 = sbr.rel (0) target = $region13
    $region12: #{tpu_custom_call.1} parent=1 // pred_region
      %s21 = ssub.s32 8192, 8192
      %22 = vsyncadd [#allocation5], %s21
      %s23 = sshll.u32 [#allocation4], 4
      %s24 = int_to_ptr.vmem [resolvable:$true] %s23
      %29 = dma.hbm_to_vmem [thread:$0]  %s2, 8192, %s24, [#allocation5], 512, 512, 32
    $region13: #{tpu_custom_call.1} parent=1 // pred_fallthru
      _
    // Predicated region
    $region14: #{tpu_custom_call.1} parent=1 // pred_check
      _
    $region15: #{tpu_custom_call.1} parent=1 // pred_check_branch
      %31 = sbr.rel (0) target = $region17
    $region16: #{tpu_custom_call.1} parent=1 // pred_region
      _
    $region17: #{tpu_custom_call.1} parent=1 // pred_fallthru
      _
    // Predicated region
    $region18: #{tpu_custom_call.1} parent=1 // pred_check
      _
    $region19: #{tpu_custom_call.1} parent=1 // pred_check_branch
      %33 = sbr.rel (0) target = $region21
    $region20: #{tpu_custom_call.1} parent=1 // pred_region
      %s35 = ssub.s32 2048, 2048
      %36 = vsyncadd [#allocation8], %s35
      %s37 = sshll.u32 [#allocation7], 4
      %s38 = int_to_ptr.vmem [resolvable:$true] %s37
      %43 = dma.hbm_to_vmem [thread:$0]  %s4, 2048, %s38, [#allocation8], 128, 128, 8
    $region21: #{tpu_custom_call.1} parent=1 // pred_fallthru
      _
    // Predicated region
    $region22: #{tpu_custom_call.1} parent=1 // pred_check
      _
    $region23: #{tpu_custom_call.1} parent=1 // pred_check_branch
      %45 = sbr.rel (0) target = $region25
    $region24: #{tpu_custom_call.1} parent=1 // pred_region
      _
    $region25: #{tpu_custom_call.1} parent=1 // pred_fallthru
      _
    // Predicated region
    $region26: #{tpu_custom_call.1} parent=1 // pred_check
      _
    $region27: #{tpu_custom_call.1} parent=1 // pred_check_branch
      %47 = sbr.rel (0) target = $region29
    $region28: #{tpu_custom_call.1} parent=1 // pred_region
      %48 = dma.done [#allocation5], 8192
    $region29: #{tpu_custom_call.1} parent=1 // pred_fallthru
      _
    // Predicated region
    $region30: #{tpu_custom_call.1} parent=1 // pred_check
      _
    $region31: #{tpu_custom_call.1} parent=1 // pred_check_branch
      %50 = sbr.rel (0) target = $region33
    $region32: #{tpu_custom_call.1} parent=1 // pred_region
      %51 = dma.done [#allocation8], 2048
    $region33: #{tpu_custom_call.1} parent=1 // pred_fallthru
      _
    %v52 = vld [vmem:[%s0] sm:$0xff]
    %v53 = vld [vmem:[%s0 + $0x8] sm:$0xff]
    %v54 = vld [vmem:[%s0 + $0x10] sm:$0xff]
    %v55 = vld [vmem:[%s0 + $0x18] sm:$0xff]
    %v56 = vld [vmem:[%s0 + $0x20] sm:$0xff]
    %v57 = vld [vmem:[%s0 + $0x28] sm:$0xff]
    %v58 = vld [vmem:[%s0 + $0x30] sm:$0xff]
    %v59 = vld [vmem:[%s0 + $0x38] sm:$0xff]
    %v60 = vld [vmem:[%s1] sm:$0xff]
    %v61 = vld [vmem:[%s1 + $0x8] sm:$0xff]
    %v62 = vld [vmem:[%s3] sm:$0xf]
    %v64 = vlaneseq
    %v65 = vshrl.u32 %v64, 7
    %v66 = vsub.s32 0, %v65
    %v67 = vrot.slane %v62, %v66
    %v68 = vlaneseq
    %v69 = vshrl.u32 %v68, 7
    %v70 = vsub.s32 1, %v69
    %v71 = vrot.slane %v62, %v70
    %v72 = vlaneseq
    %v73 = vshrl.u32 %v72, 7
    %v74 = vsub.s32 2, %v73
    %v75 = vrot.slane %v62, %v74
    %v76 = vlaneseq
    %v77 = vshrl.u32 %v76, 7
    %v78 = vsub.s32 3, %v77
    %v79 = vrot.slane %v62, %v78
    %v86 = vcombine.high %v60, %v60
    %v87 = vcombine.high %v61, %v61
    %vm88 = vcmask 31744
    %v90 = vsel %vm88, %v52, 0
    %v93 = vsel %vm88, %v53, 0
    %v96 = vsel %vm88, %v54, 0
    %v99 = vsel %vm88, %v55, 0
    %v102 = vsel %vm88, %v56, 0
    %v105 = vsel %vm88, %v57, 0
    %v108 = vsel %vm88, %v58, 0
    %v111 = vsel %vm88, %v59, 0
    %vm113 = vcmask 1043456
    %v114 = vsel %vm113, %v60, 0
    %v116 = vsel %vm113, %v86, 0
    %v118 = vsel %vm113, %v61, 0
    %v120 = vsel %vm113, %v87, 0
    %122 = vmatprep.subr.mxu0 0.0
    %123 = vmatpush1.msra.mxu0 0.0
    %124 = vmatprep.subr.mxu0 0.0
    %125 = vmatpush1.msra.mxu0 0.0
    %126 = vmatprep.subr.mxu0 0.0
    %127 = vmatpush1.msra.mxu0 0.0
    %128 = vmatprep.subr.mxu0 0.0
    %129 = vmatpush1.msra.mxu0 0.0
    %130 = vmatprep.subr.mxu0 0.0
    %131 = vmatpush1.msra.mxu0 0.0
    %132 = vmatprep.subr.mxu0 0.0
    %133 = vmatpush1.msra.mxu0 0.0
    %134 = vmatprep.subr.mxu0 0.0
    %135 = vmatpush1.msra.mxu0 0.0
    %136 = vmatprep.subr.mxu0 0.0
    %137 = vmatpush1.msra.mxu0 0.0
    %138 = vmatprep.subr.mxu0 0.0
    %139 = vmatpush1.msra.mxu0 0.0
    %140 = vmatprep.subr.mxu0 0.0
    %141 = vmatpush1.msra.mxu0 0.0
    %142 = vmatprep.subr.mxu0 0.0
    %143 = vmatpush1.msra.mxu0 0.0
    %144 = vmatprep.subr.mxu0 0.0
    %145 = vmatpush1.msra.mxu0 0.0
    %146 = vmatprep.subr.mxu0 0.0
    %147 = vmatpush1.msra.mxu0 0.0
    %148 = vmatprep.subr.mxu0 0.0
    %149 = vmatpush1.msra.mxu0 0.0
    %150 = vmatprep.subr.mxu0 0.0
    %151 = vmatpush1.msra.mxu0 0.0
    %152 = vmatprep.subr.mxu0 %v116
    %153 = vmatpush1.msra.mxu0 %v114
    %154 = vmatprep.subr.mxu0 0.0
    %155 = vmatpush2.msra.mxu0 0.0
    %156 = vmatprep.subr.mxu0 0.0
    %157 = vmatpush2.msra.mxu0 0.0
    %158 = vmatprep.subr.mxu0 0.0
    %159 = vmatpush2.msra.mxu0 0.0
    %160 = vmatprep.subr.mxu0 0.0
    %161 = vmatpush2.msra.mxu0 0.0
    %162 = vmatprep.subr.mxu0 0.0
    %163 = vmatpush2.msra.mxu0 0.0
    %164 = vmatprep.subr.mxu0 0.0
    %165 = vmatpush2.msra.mxu0 0.0
    %166 = vmatprep.subr.mxu0 0.0
    %167 = vmatpush2.msra.mxu0 0.0
    %168 = vmatprep.subr.mxu0 0.0
    %169 = vmatpush2.msra.mxu0 0.0
    %170 = vmatprep.subr.mxu0 0.0
    %171 = vmatpush2.msra.mxu0 0.0
    %172 = vmatprep.subr.mxu0 0.0
    %173 = vmatpush2.msra.mxu0 0.0
    %174 = vmatprep.subr.mxu0 0.0
    %175 = vmatpush2.msra.mxu0 0.0
    %176 = vmatprep.subr.mxu0 0.0
    %177 = vmatpush2.msra.mxu0 0.0
    %178 = vmatprep.subr.mxu0 0.0
    %179 = vmatpush2.msra.mxu0 0.0
    %180 = vmatprep.subr.mxu0 0.0
    %181 = vmatpush2.msra.mxu0 0.0
    %182 = vmatprep.subr.mxu0 0.0
    %183 = vmatpush2.msra.mxu0 0.0
    %184 = vmatprep.subr.mxu0 0.0
    %185 = vmatpush2.msra.mxu0 0.0
    %186 = vmatprep.mubr.f32.mxu0 0.0
    %187 = vmatmul.mubr.f32.gmra.mxu0 %v90
    %v188 = vpop.f32.mrf.mxu0
    %v189 = vadd.f32 %v67, %v188
    %v190 = vpop.f32.mrf.mxu0
    %v191 = vadd.f32 %v71, %v190
    %192 = vmatprep.mubr.f32.mxu0 0.0
    %193 = vmatmul.mubr.f32.gmra.mxu0 %v93
    %v194 = vpop.f32.mrf.mxu0
    %v195 = vadd.f32 %v67, %v194
    %v196 = vpop.f32.mrf.mxu0
    %v197 = vadd.f32 %v71, %v196
    %198 = vmatprep.mubr.f32.mxu0 0.0
    %199 = vmatmul.mubr.f32.gmra.mxu0 %v96
    %v200 = vpop.f32.mrf.mxu0
    %v201 = vadd.f32 %v67, %v200
    %v202 = vpop.f32.mrf.mxu0
    %v203 = vadd.f32 %v71, %v202
    %204 = vmatprep.mubr.f32.mxu0 0.0
    %205 = vmatmul.mubr.f32.gmra.mxu0 %v99
    %v206 = vpop.f32.mrf.mxu0
    %v207 = vadd.f32 %v67, %v206
    %v208 = vpop.f32.mrf.mxu0
    %v209 = vadd.f32 %v71, %v208
    %210 = vmatprep.mubr.f32.mxu0 0.0
    %211 = vmatmul.mubr.f32.gmra.mxu0 %v102
    %v212 = vpop.f32.mrf.mxu0
    %v213 = vadd.f32 %v67, %v212
    %v214 = vpop.f32.mrf.mxu0
    %v215 = vadd.f32 %v71, %v214
    %216 = vmatprep.mubr.f32.mxu0 0.0
    %217 = vmatmul.mubr.f32.gmra.mxu0 %v105
    %v218 = vpop.f32.mrf.mxu0
    %v219 = vadd.f32 %v67, %v218
    %v220 = vpop.f32.mrf.mxu0
    %v221 = vadd.f32 %v71, %v220
    %222 = vmatprep.mubr.f32.mxu0 0.0
    %223 = vmatmul.mubr.f32.gmra.mxu0 %v108
    %v224 = vpop.f32.mrf.mxu0
    %v225 = vadd.f32 %v67, %v224
    %v226 = vpop.f32.mrf.mxu0
    %v227 = vadd.f32 %v71, %v226
    %228 = vmatprep.mubr.f32.mxu0 0.0
    %229 = vmatmul.mubr.f32.gmra.mxu0 %v111
    %v230 = vpop.f32.mrf.mxu0
    %v231 = vadd.f32 %v67, %v230
    %v232 = vpop.f32.mrf.mxu0
    %v233 = vadd.f32 %v71, %v232
    %234 = vdwg.mxu0
    %235 = vmatprep.subr.mxu0 0.0
    %236 = vmatpush1.msra.mxu0 0.0
    %237 = vmatprep.subr.mxu0 0.0
    %238 = vmatpush1.msra.mxu0 0.0
    %239 = vmatprep.subr.mxu0 0.0
    %240 = vmatpush1.msra.mxu0 0.0
    %241 = vmatprep.subr.mxu0 0.0
    %242 = vmatpush1.msra.mxu0 0.0
    %243 = vmatprep.subr.mxu0 0.0
    %244 = vmatpush1.msra.mxu0 0.0
    %245 = vmatprep.subr.mxu0 0.0
    %246 = vmatpush1.msra.mxu0 0.0
    %247 = vmatprep.subr.mxu0 0.0
    %248 = vmatpush1.msra.mxu0 0.0
    %249 = vmatprep.subr.mxu0 0.0
    %250 = vmatpush1.msra.mxu0 0.0
    %251 = vmatprep.subr.mxu0 0.0
    %252 = vmatpush1.msra.mxu0 0.0
    %253 = vmatprep.subr.mxu0 0.0
    %254 = vmatpush1.msra.mxu0 0.0
    %255 = vmatprep.subr.mxu0 0.0
    %256 = vmatpush1.msra.mxu0 0.0
    %257 = vmatprep.subr.mxu0 0.0
    %258 = vmatpush1.msra.mxu0 0.0
    %259 = vmatprep.subr.mxu0 0.0
    %260 = vmatpush1.msra.mxu0 0.0
    %261 = vmatprep.subr.mxu0 0.0
    %262 = vmatpush1.msra.mxu0 0.0
    %263 = vmatprep.subr.mxu0 0.0
    %264 = vmatpush1.msra.mxu0 0.0
    %265 = vmatprep.subr.mxu0 %v120
    %266 = vmatpush1.msra.mxu0 %v118
    %267 = vmatprep.subr.mxu0 0.0
    %268 = vmatpush2.msra.mxu0 0.0
    %269 = vmatprep.subr.mxu0 0.0
    %270 = vmatpush2.msra.mxu0 0.0
    %271 = vmatprep.subr.mxu0 0.0
    %272 = vmatpush2.msra.mxu0 0.0
    %273 = vmatprep.subr.mxu0 0.0
    %274 = vmatpush2.msra.mxu0 0.0
    %275 = vmatprep.subr.mxu0 0.0
    %276 = vmatpush2.msra.mxu0 0.0
    %277 = vmatprep.subr.mxu0 0.0
    %278 = vmatpush2.msra.mxu0 0.0
    %279 = vmatprep.subr.mxu0 0.0
    %280 = vmatpush2.msra.mxu0 0.0
    %281 = vmatprep.subr.mxu0 0.0
    %282 = vmatpush2.msra.mxu0 0.0
    %283 = vmatprep.subr.mxu0 0.0
    %284 = vmatpush2.msra.mxu0 0.0
    %285 = vmatprep.subr.mxu0 0.0
    %286 = vmatpush2.msra.mxu0 0.0
    %287 = vmatprep.subr.mxu0 0.0
    %288 = vmatpush2.msra.mxu0 0.0
    %289 = vmatprep.subr.mxu0 0.0
    %290 = vmatpush2.msra.mxu0 0.0
    %291 = vmatprep.subr.mxu0 0.0
    %292 = vmatpush2.msra.mxu0 0.0
    %293 = vmatprep.subr.mxu0 0.0
    %294 = vmatpush2.msra.mxu0 0.0
    %295 = vmatprep.subr.mxu0 0.0
    %296 = vmatpush2.msra.mxu0 0.0
    %297 = vmatprep.subr.mxu0 0.0
    %298 = vmatpush2.msra.mxu0 0.0
    %299 = vmatprep.mubr.f32.mxu0 0.0
    %300 = vmatmul.mubr.f32.gmra.mxu0 %v90
    %v301 = vpop.f32.mrf.mxu0
    %v302 = vadd.f32 %v75, %v301
    %v303 = vpop.f32.mrf.mxu0
    %v304 = vadd.f32 %v79, %v303
    %305 = vmatprep.mubr.f32.mxu0 0.0
    %306 = vmatmul.mubr.f32.gmra.mxu0 %v93
    %v307 = vpop.f32.mrf.mxu0
    %v308 = vadd.f32 %v75, %v307
    %v309 = vpop.f32.mrf.mxu0
    %v310 = vadd.f32 %v79, %v309
    %311 = vmatprep.mubr.f32.mxu0 0.0
    %312 = vmatmul.mubr.f32.gmra.mxu0 %v96
    %v313 = vpop.f32.mrf.mxu0
    %v314 = vadd.f32 %v75, %v313
    %v315 = vpop.f32.mrf.mxu0
    %v316 = vadd.f32 %v79, %v315
    %317 = vmatprep.mubr.f32.mxu0 0.0
    %318 = vmatmul.mubr.f32.gmra.mxu0 %v99
    %v319 = vpop.f32.mrf.mxu0
    %v320 = vadd.f32 %v75, %v319
    %v321 = vpop.f32.mrf.mxu0
    %v322 = vadd.f32 %v79, %v321
    %323 = vmatprep.mubr.f32.mxu0 0.0
    %324 = vmatmul.mubr.f32.gmra.mxu0 %v102
    %v325 = vpop.f32.mrf.mxu0
    %v326 = vadd.f32 %v75, %v325
    %v327 = vpop.f32.mrf.mxu0
    %v328 = vadd.f32 %v79, %v327
    %329 = vmatprep.mubr.f32.mxu0 0.0
    %330 = vmatmul.mubr.f32.gmra.mxu0 %v105
    %v331 = vpop.f32.mrf.mxu0
    %v332 = vadd.f32 %v75, %v331
    %v333 = vpop.f32.mrf.mxu0
    %v334 = vadd.f32 %v79, %v333
    %335 = vmatprep.mubr.f32.mxu0 0.0
    %336 = vmatmul.mubr.f32.gmra.mxu0 %v108
    %v337 = vpop.f32.mrf.mxu0
    %v338 = vadd.f32 %v75, %v337
    %v339 = vpop.f32.mrf.mxu0
    %v340 = vadd.f32 %v79, %v339
    %341 = vmatprep.mubr.f32.mxu0 0.0
    %342 = vmatmul.mubr.f32.gmra.mxu0 %v111
    %v343 = vpop.f32.mrf.mxu0
    %v344 = vadd.f32 %v75, %v343
    %v345 = vpop.f32.mrf.mxu0
    %v346 = vadd.f32 %v79, %v345
    %347 = vdwg.mxu0
    %348 = vst [vmem:[#allocation2] sm:$0xff] %v189
    %349 = vst [vmem:[#allocation2 + $0x8] sm:$0xff] %v191
    %350 = vst [vmem:[#allocation2 + $0x10] sm:$0xff] %v302
    %351 = vst [vmem:[#allocation2 + $0x18] sm:$0xff] %v304
    %352 = vst [vmem:[#allocation2 + $0x20] sm:$0xff] %v195
    %353 = vst [vmem:[#allocation2 + $0x28] sm:$0xff] %v197
    %354 = vst [vmem:[#allocation2 + $0x30] sm:$0xff] %v308
    %355 = vst [vmem:[#allocation2 + $0x38] sm:$0xff] %v310
    %356 = vst [vmem:[#allocation2 + $0x40] sm:$0xff] %v201
    %357 = vst [vmem:[#allocation2 + $0x48] sm:$0xff] %v203
    %358 = vst [vmem:[#allocation2 + $0x50] sm:$0xff] %v314
    %359 = vst [vmem:[#allocation2 + $0x58] sm:$0xff] %v316
    %360 = vst [vmem:[#allocation2 + $0x60] sm:$0xff] %v207
    %361 = vst [vmem:[#allocation2 + $0x68] sm:$0xff] %v209
    %362 = vst [vmem:[#allocation2 + $0x70] sm:$0xff] %v320
    %363 = vst [vmem:[#allocation2 + $0x78] sm:$0xff] %v322
    %364 = vst [vmem:[#allocation2 + $0x80] sm:$0xff] %v213
    %365 = vst [vmem:[#allocation2 + $0x88] sm:$0xff] %v215
    %366 = vst [vmem:[#allocation2 + $0x90] sm:$0xff] %v326
    %367 = vst [vmem:[#allocation2 + $0x98] sm:$0xff] %v328
    %368 = vst [vmem:[#allocation2 + $0xa0] sm:$0xff] %v219
    %369 = vst [vmem:[#allocation2 + $0xa8] sm:$0xff] %v221
    %370 = vst [vmem:[#allocation2 + $0xb0] sm:$0xff] %v332
    %371 = vst [vmem:[#allocation2 + $0xb8] sm:$0xff] %v334
    %372 = vst [vmem:[#allocation2 + $0xc0] sm:$0xff] %v225
    %373 = vst [vmem:[#allocation2 + $0xc8] sm:$0xff] %v227
    %374 = vst [vmem:[#allocation2 + $0xd0] sm:$0xff] %v338
    %375 = vst [vmem:[#allocation2 + $0xd8] sm:$0xff] %v340
    %376 = vst [vmem:[#allocation2 + $0xe0] sm:$0xff] %v231
    %377 = vst [vmem:[#allocation2 + $0xe8] sm:$0xff] %v233
    %378 = vst [vmem:[#allocation2 + $0xf0] sm:$0xff] %v344
    %379 = vst [vmem:[#allocation2 + $0xf8] sm:$0xff] %v346
    %v380 = vld [vmem:[#allocation4] sm:$0xff]
    %v381 = vld [vmem:[#allocation4 + $0x8] sm:$0xff]
    %v382 = vld [vmem:[#allocation4 + $0x10] sm:$0xff]
    %v383 = vld [vmem:[#allocation4 + $0x18] sm:$0xff]
    %v384 = vld [vmem:[#allocation4 + $0x20] sm:$0xff]
    %v385 = vld [vmem:[#allocation4 + $0x28] sm:$0xff]
    %v386 = vld [vmem:[#allocation4 + $0x30] sm:$0xff]
    %v387 = vld [vmem:[#allocation4 + $0x38] sm:$0xff]
    %v388 = vld [vmem:[#allocation4 + $0x40] sm:$0xff]
    %v389 = vld [vmem:[#allocation4 + $0x48] sm:$0xff]
    %v390 = vld [vmem:[#allocation4 + $0x50] sm:$0xff]
    %v391 = vld [vmem:[#allocation4 + $0x58] sm:$0xff]
    %v392 = vld [vmem:[#allocation4 + $0x60] sm:$0xff]
    %v393 = vld [vmem:[#allocation4 + $0x68] sm:$0xff]
    %v394 = vld [vmem:[#allocation4 + $0x70] sm:$0xff]
    %v395 = vld [vmem:[#allocation4 + $0x78] sm:$0xff]
    %v396 = vld [vmem:[#allocation4 + $0x80] sm:$0xff]
    %v397 = vld [vmem:[#allocation4 + $0x88] sm:$0xff]
    %v398 = vld [vmem:[#allocation4 + $0x90] sm:$0xff]
    %v399 = vld [vmem:[#allocation4 + $0x98] sm:$0xff]
    %v400 = vld [vmem:[#allocation4 + $0xa0] sm:$0xff]
    %v401 = vld [vmem:[#allocation4 + $0xa8] sm:$0xff]
    %v402 = vld [vmem:[#allocation4 + $0xb0] sm:$0xff]
    %v403 = vld [vmem:[#allocation4 + $0xb8] sm:$0xff]
    %v404 = vld [vmem:[#allocation4 + $0xc0] sm:$0xff]
    %v405 = vld [vmem:[#allocation4 + $0xc8] sm:$0xff]
    %v406 = vld [vmem:[#allocation4 + $0xd0] sm:$0xff]
    %v407 = vld [vmem:[#allocation4 + $0xd8] sm:$0xff]
    %v408 = vld [vmem:[#allocation4 + $0xe0] sm:$0xff]
    %v409 = vld [vmem:[#allocation4 + $0xe8] sm:$0xff]
    %v410 = vld [vmem:[#allocation4 + $0xf0] sm:$0xff]
    %v411 = vld [vmem:[#allocation4 + $0xf8] sm:$0xff]
    %v412 = vld [vmem:[#allocation4 + $0x100] sm:$0xff]
    %v413 = vld [vmem:[#allocation4 + $0x108] sm:$0xff]
    %v414 = vld [vmem:[#allocation4 + $0x110] sm:$0xff]
    %v415 = vld [vmem:[#allocation4 + $0x118] sm:$0xff]
    %v416 = vld [vmem:[#allocation4 + $0x120] sm:$0xff]
    %v417 = vld [vmem:[#allocation4 + $0x128] sm:$0xff]
    %v418 = vld [vmem:[#allocation4 + $0x130] sm:$0xff]
    %v419 = vld [vmem:[#allocation4 + $0x138] sm:$0xff]
    %v420 = vld [vmem:[#allocation4 + $0x140] sm:$0xff]
    %v421 = vld [vmem:[#allocation4 + $0x148] sm:$0xff]
    %v422 = vld [vmem:[#allocation4 + $0x150] sm:$0xff]
    %v423 = vld [vmem:[#allocation4 + $0x158] sm:$0xff]
    %v424 = vld [vmem:[#allocation4 + $0x160] sm:$0xff]
    %v425 = vld [vmem:[#allocation4 + $0x168] sm:$0xff]
    %v426 = vld [vmem:[#allocation4 + $0x170] sm:$0xff]
    %v427 = vld [vmem:[#allocation4 + $0x178] sm:$0xff]
    %v428 = vld [vmem:[#allocation4 + $0x180] sm:$0xff]
    %v429 = vld [vmem:[#allocation4 + $0x188] sm:$0xff]
    %v430 = vld [vmem:[#allocation4 + $0x190] sm:$0xff]
    %v431 = vld [vmem:[#allocation4 + $0x198] sm:$0xff]
    %v432 = vld [vmem:[#allocation4 + $0x1a0] sm:$0xff]
    %v433 = vld [vmem:[#allocation4 + $0x1a8] sm:$0xff]
    %v434 = vld [vmem:[#allocation4 + $0x1b0] sm:$0xff]
    %v435 = vld [vmem:[#allocation4 + $0x1b8] sm:$0xff]
    %v436 = vld [vmem:[#allocation4 + $0x1c0] sm:$0xff]
    %v437 = vld [vmem:[#allocation4 + $0x1c8] sm:$0xff]
    %v438 = vld [vmem:[#allocation4 + $0x1d0] sm:$0xff]
    %v439 = vld [vmem:[#allocation4 + $0x1d8] sm:$0xff]
    %v440 = vld [vmem:[#allocation4 + $0x1e0] sm:$0xff]
    %v441 = vld [vmem:[#allocation4 + $0x1e8] sm:$0xff]
    %v442 = vld [vmem:[#allocation4 + $0x1f0] sm:$0xff]
    %v443 = vld [vmem:[#allocation4 + $0x1f8] sm:$0xff]
    %v444 = vlaneseq
    %v445 = vand.u32 %v444, 127
    %v446 = vadd.s32 %v445, 128
    %v447 = vadd.s32 %v445, 256
    %v448 = vadd.s32 %v445, 384
    %vm449 = vcmp.ge.s32.totalorder %v445, 256
    %vm450 = vcmp.ge.s32.totalorder %v446, 256
    %vm451 = vcmp.ge.s32.totalorder %v447, 256
    %vm452 = vcmp.ge.s32.totalorder %v448, 256
    %vm453 = vcmp.lt.s32.totalorder %v445, 384
    %vm454 = vcmp.lt.s32.totalorder %v446, 384
    %vm455 = vcmp.lt.s32.totalorder %v447, 384
    %vm456 = vcmp.lt.s32.totalorder %v448, 384
    %vm457 = vmand %vm449, %vm453
    %vm458 = vmand %vm450, %vm454
    %vm459 = vmand %vm451, %vm455
    %vm460 = vmand %vm452, %vm456
    %v461 = vld [vmem:[#allocation2] sm:$0xff]
    %v462 = vld [vmem:[#allocation2 + $0x8] sm:$0xff]
    %v463 = vld [vmem:[#allocation2 + $0x10] sm:$0xff]
    %v464 = vld [vmem:[#allocation2 + $0x18] sm:$0xff]
    %465 = vmatprep.subr.mxu0 %v441
    %466 = vmatpush1.msra.mxu0 %v440
    %467 = vmatprep.subr.mxu0 %v437
    %468 = vmatpush1.msra.mxu0 %v436
    %469 = vmatprep.subr.mxu0 %v433
    %470 = vmatpush1.msra.mxu0 %v432
    %471 = vmatprep.subr.mxu0 %v429
    %472 = vmatpush1.msra.mxu0 %v428
    %473 = vmatprep.subr.mxu0 %v425
    %474 = vmatpush1.msra.mxu0 %v424
    %475 = vmatprep.subr.mxu0 %v421
    %476 = vmatpush1.msra.mxu0 %v420
    %477 = vmatprep.subr.mxu0 %v417
    %478 = vmatpush1.msra.mxu0 %v416
    %479 = vmatprep.subr.mxu0 %v413
    %480 = vmatpush1.msra.mxu0 %v412
    %481 = vmatprep.subr.mxu0 %v409
    %482 = vmatpush1.msra.mxu0 %v408
    %483 = vmatprep.subr.mxu0 %v405
    %484 = vmatpush1.msra.mxu0 %v404
    %485 = vmatprep.subr.mxu0 %v401
    %486 = vmatpush1.msra.mxu0 %v400
    %487 = vmatprep.subr.mxu0 %v397
    %488 = vmatpush1.msra.mxu0 %v396
    %489 = vmatprep.subr.mxu0 %v393
    %490 = vmatpush1.msra.mxu0 %v392
    %491 = vmatprep.subr.mxu0 %v389
    %492 = vmatpush1.msra.mxu0 %v388
    %493 = vmatprep.subr.mxu0 %v385
    %494 = vmatpush1.msra.mxu0 %v384
    %495 = vmatprep.subr.mxu0 %v381
    %496 = vmatpush1.msra.mxu0 %v380
    %497 = vmatprep.subr.mxu0 0.0
    %498 = vmatpush2.msra.mxu0 0.0
    %499 = vmatprep.subr.mxu0 0.0
    %500 = vmatpush2.msra.mxu0 0.0
    %501 = vmatprep.subr.mxu0 0.0
    %502 = vmatpush2.msra.mxu0 0.0
    %503 = vmatprep.subr.mxu0 0.0
    %504 = vmatpush2.msra.mxu0 0.0
    %505 = vmatprep.subr.mxu0 0.0
    %506 = vmatpush2.msra.mxu0 0.0
    %507 = vmatprep.subr.mxu0 0.0
    %508 = vmatpush2.msra.mxu0 0.0
    %509 = vmatprep.subr.mxu0 0.0
    %510 = vmatpush2.msra.mxu0 0.0
    %511 = vmatprep.subr.mxu0 0.0
    %512 = vmatpush2.msra.mxu0 0.0
    %513 = vmatprep.subr.mxu0 0.0
    %514 = vmatpush2.msra.mxu0 0.0
    %515 = vmatprep.subr.mxu0 0.0
    %516 = vmatpush2.msra.mxu0 0.0
    %517 = vmatprep.subr.mxu0 0.0
    %518 = vmatpush2.msra.mxu0 0.0
    %519 = vmatprep.subr.mxu0 0.0
    %520 = vmatpush2.msra.mxu0 0.0
    %521 = vmatprep.subr.mxu0 0.0
    %522 = vmatpush2.msra.mxu0 0.0
    %523 = vmatprep.subr.mxu0 0.0
    %524 = vmatpush2.msra.mxu0 0.0
    %525 = vmatprep.subr.mxu0 0.0
    %526 = vmatpush2.msra.mxu0 0.0
    %527 = vmatprep.subr.mxu0 0.0
    %528 = vmatpush2.msra.mxu0 0.0
    %529 = vmatprep.mubr.f32.mxu0 0.0
    %530 = vmatmul.mubr.f32.gmra.mxu0 0.0
    %v531 = vpop.f32.mrf.mxu0
    %v532 = vadd.f32 0.0, %v531
    %v533 = vpop.f32.mrf.mxu0
    %v534 = vadd.f32 0.0, %v533
    %535 = vdwg.mxu0
    %536 = vmatprep.subr.mxu0 %v443
    %537 = vmatpush1.msra.mxu0 %v442
    %538 = vmatprep.subr.mxu0 %v439
    %539 = vmatpush1.msra.mxu0 %v438
    %540 = vmatprep.subr.mxu0 %v435
    %541 = vmatpush1.msra.mxu0 %v434
    %542 = vmatprep.subr.mxu0 %v431
    %543 = vmatpush1.msra.mxu0 %v430
    %544 = vmatprep.subr.mxu0 %v427
    %545 = vmatpush1.msra.mxu0 %v426
    %546 = vmatprep.subr.mxu0 %v423
    %547 = vmatpush1.msra.mxu0 %v422
    %548 = vmatprep.subr.mxu0 %v419
    %549 = vmatpush1.msra.mxu0 %v418
    %550 = vmatprep.subr.mxu0 %v415
    %551 = vmatpush1.msra.mxu0 %v414
    %552 = vmatprep.subr.mxu0 %v411
    %553 = vmatpush1.msra.mxu0 %v410
    %554 = vmatprep.subr.mxu0 %v407
    %555 = vmatpush1.msra.mxu0 %v406
    %556 = vmatprep.subr.mxu0 %v403
    %557 = vmatpush1.msra.mxu0 %v402
    %558 = vmatprep.subr.mxu0 %v399
    %559 = vmatpush1.msra.mxu0 %v398
    %560 = vmatprep.subr.mxu0 %v395
    %561 = vmatpush1.msra.mxu0 %v394
    %562 = vmatprep.subr.mxu0 %v391
    %563 = vmatpush1.msra.mxu0 %v390
    %564 = vmatprep.subr.mxu0 %v387
    %565 = vmatpush1.msra.mxu0 %v386
    %566 = vmatprep.subr.mxu0 %v383
    %567 = vmatpush1.msra.mxu0 %v382
    %568 = vmatprep.subr.mxu0 0.0
    %569 = vmatpush2.msra.mxu0 0.0
    %570 = vmatprep.subr.mxu0 0.0
    %571 = vmatpush2.msra.mxu0 0.0
    %572 = vmatprep.subr.mxu0 0.0
    %573 = vmatpush2.msra.mxu0 0.0
    %574 = vmatprep.subr.mxu0 0.0
    %575 = vmatpush2.msra.mxu0 0.0
    %576 = vmatprep.subr.mxu0 0.0
    %577 = vmatpush2.msra.mxu0 0.0
    %578 = vmatprep.subr.mxu0 0.0
    %579 = vmatpush2.msra.mxu0 0.0
    %580 = vmatprep.subr.mxu0 0.0
    %581 = vmatpush2.msra.mxu0 0.0
    %582 = vmatprep.subr.mxu0 0.0
    %583 = vmatpush2.msra.mxu0 0.0
    %584 = vmatprep.subr.mxu0 0.0
    %585 = vmatpush2.msra.mxu0 0.0
    %586 = vmatprep.subr.mxu0 0.0
    %587 = vmatpush2.msra.mxu0 0.0
    %588 = vmatprep.subr.mxu0 0.0
    %589 = vmatpush2.msra.mxu0 0.0
    %590 = vmatprep.subr.mxu0 0.0
    %591 = vmatpush2.msra.mxu0 0.0
    %592 = vmatprep.subr.mxu0 0.0
    %593 = vmatpush2.msra.mxu0 0.0
    %594 = vmatprep.subr.mxu0 0.0
    %595 = vmatpush2.msra.mxu0 0.0
    %596 = vmatprep.subr.mxu0 0.0
    %597 = vmatpush2.msra.mxu0 0.0
    %598 = vmatprep.subr.mxu0 0.0
    %599 = vmatpush2.msra.mxu0 0.0
    %600 = vmatprep.mubr.f32.mxu0 0.0
    %601 = vmatmul.mubr.f32.gmra.mxu0 0.0
    %v602 = vpop.f32.mrf.mxu0
    %v603 = vadd.f32 0.0, %v602
    %v604 = vpop.f32.mrf.mxu0
    %v605 = vadd.f32 0.0, %v604
    %606 = vdwg.mxu0
    %v607 = vadd.f32 %v461, %v532
    %v608 = vadd.f32 %v462, %v534
    %v609 = vadd.f32 %v463, %v603
    %v610 = vadd.f32 %v464, %v605
    %v611 = vmul.f32 %v607, 2.0
    %v612 = vmul.f32 %v608, 2.0
    %v613 = vmul.f32 %v609, 2.0
    %v614 = vmul.f32 %v610, 2.0
    %v615 = vsel %vm457, %v611, %v607
    %v616 = vsel %vm458, %v612, %v608
    %v617 = vsel %vm459, %v613, %v609
    %v618 = vsel %vm460, %v614, %v610
    %v619 = vxor.u32 %v615, 2147483648
    %v620 = vxor.u32 %v616, 2147483648
    %v621 = vxor.u32 %v617, 2147483648
    %v622 = vxor.u32 %v618, 2147483648
    %v623 = vmul.f32 %v619, 1.442695
    %v624 = vpow.pop %v623
    %v625 = vmul.f32 %v620, 1.442695
    %v626 = vpow.pop %v625
    %v627 = vmul.f32 %v621, 1.442695
    %v628 = vpow.pop %v627
    %v629 = vmul.f32 %v622, 1.442695
    %v630 = vpow.pop %v629
    %v631 = vadd.f32 %v624, 1.0
    %v632 = vadd.f32 %v626, 1.0
    %v633 = vadd.f32 %v628, 1.0
    %v634 = vadd.f32 %v630, 1.0
    %v635 = vrcp.pop %v631
    %v636 = vmul.f32 1.0, %v635
    %v637 = vrcp.pop %v632
    %v638 = vmul.f32 1.0, %v637
    %v639 = vrcp.pop %v633
    %v640 = vmul.f32 1.0, %v639
    %v641 = vrcp.pop %v634
    %v642 = vmul.f32 1.0, %v641
    %v643 = vmul.f32 %v636, 2.0
    %v644 = vmul.f32 %v638, 2.0
    %v645 = vmul.f32 %v640, 2.0
    %v646 = vmul.f32 %v642, 2.0
    %v647 = vsub.f32 %v643, 1.0
    %v648 = vsub.f32 %v644, 1.0
    %v649 = vsub.f32 %v645, 1.0
    %v650 = vsub.f32 %v646, 1.0
    %v651 = vsel %vm457, %v647, %v636
    %v652 = vsel %vm458, %v648, %v638
    %v653 = vsel %vm459, %v649, %v640
    %v654 = vsel %vm460, %v650, %v642
    %v655 = vmul.f32 %v652, 0.0
    %v656 = vmul.f32 %v651, %v653
    %v657 = vadd.f32 %v655, %v656
    %v658 = vtanh.pop %v657
    %v659 = vmul.f32 %v654, %v658
    %660 = vst [vmem:[#allocation3] sm:$0xff] %v659
    %v661 = vld [vmem:[#allocation2 + $0x20] sm:$0xff]
    %v662 = vld [vmem:[#allocation2 + $0x28] sm:$0xff]
    %v663 = vld [vmem:[#allocation2 + $0x30] sm:$0xff]
    %v664 = vld [vmem:[#allocation2 + $0x38] sm:$0xff]
    %665 = vmatprep.subr.mxu0 %v441
    %666 = vmatpush1.msra.mxu0 %v440
    %667 = vmatprep.subr.mxu0 %v437
    %668 = vmatpush1.msra.mxu0 %v436
    %669 = vmatprep.subr.mxu0 %v433
    %670 = vmatpush1.msra.mxu0 %v432
    %671 = vmatprep.subr.mxu0 %v429
    %672 = vmatpush1.msra.mxu0 %v428
    %673 = vmatprep.subr.mxu0 %v425
    %674 = vmatpush1.msra.mxu0 %v424
    %675 = vmatprep.subr.mxu0 %v421
    %676 = vmatpush1.msra.mxu0 %v420
    %677 = vmatprep.subr.mxu0 %v417
    %678 = vmatpush1.msra.mxu0 %v416
    %679 = vmatprep.subr.mxu0 %v413
    %680 = vmatpush1.msra.mxu0 %v412
    %681 = vmatprep.subr.mxu0 %v409
    %682 = vmatpush1.msra.mxu0 %v408
    %683 = vmatprep.subr.mxu0 %v405
    %684 = vmatpush1.msra.mxu0 %v404
    %685 = vmatprep.subr.mxu0 %v401
    %686 = vmatpush1.msra.mxu0 %v400
    %687 = vmatprep.subr.mxu0 %v397
    %688 = vmatpush1.msra.mxu0 %v396
    %689 = vmatprep.subr.mxu0 %v393
    %690 = vmatpush1.msra.mxu0 %v392
    %691 = vmatprep.subr.mxu0 %v389
    %692 = vmatpush1.msra.mxu0 %v388
    %693 = vmatprep.subr.mxu0 %v385
    %694 = vmatpush1.msra.mxu0 %v384
    %695 = vmatprep.subr.mxu0 %v381
    %696 = vmatpush1.msra.mxu0 %v380
    %697 = vmatprep.subr.mxu0 0.0
    %698 = vmatpush2.msra.mxu0 0.0
    %699 = vmatprep.subr.mxu0 0.0
    %700 = vmatpush2.msra.mxu0 0.0
    %701 = vmatprep.subr.mxu0 0.0
    %702 = vmatpush2.msra.mxu0 0.0
    %703 = vmatprep.subr.mxu0 0.0
    %704 = vmatpush2.msra.mxu0 0.0
    %705 = vmatprep.subr.mxu0 0.0
    %706 = vmatpush2.msra.mxu0 0.0
    %707 = vmatprep.subr.mxu0 0.0
    %708 = vmatpush2.msra.mxu0 0.0
    %709 = vmatprep.subr.mxu0 0.0
    %710 = vmatpush2.msra.mxu0 0.0
    %711 = vmatprep.subr.mxu0 0.0
    %712 = vmatpush2.msra.mxu0 0.0
    %713 = vmatprep.subr.mxu0 0.0
    %714 = vmatpush2.msra.mxu0 0.0
    %715 = vmatprep.subr.mxu0 0.0
    %716 = vmatpush2.msra.mxu0 0.0
    %717 = vmatprep.subr.mxu0 0.0
    %718 = vmatpush2.msra.mxu0 0.0
    %719 = vmatprep.subr.mxu0 0.0
    %720 = vmatpush2.msra.mxu0 0.0
    %721 = vmatprep.subr.mxu0 0.0
    %722 = vmatpush2.msra.mxu0 0.0
    %723 = vmatprep.subr.mxu0 0.0
    %724 = vmatpush2.msra.mxu0 0.0
    %725 = vmatprep.subr.mxu0 0.0
    %726 = vmatpush2.msra.mxu0 0.0
    %727 = vmatprep.subr.mxu0 0.0
    %728 = vmatpush2.msra.mxu0 0.0
    %729 = vmatprep.mubr.f32.mxu0 0.0
    %730 = vmatmul.mubr.f32.gmra.mxu0 %v659
    %v731 = vpop.f32.mrf.mxu0
    %v732 = vadd.f32 0.0, %v731
    %v733 = vpop.f32.mrf.mxu0
    %v734 = vadd.f32 0.0, %v733
    %735 = vdwg.mxu0
    %736 = vmatprep.subr.mxu0 %v443
    %737 = vmatpush1.msra.mxu0 %v442
    %738 = vmatprep.subr.mxu0 %v439
    %739 = vmatpush1.msra.mxu0 %v438
    %740 = vmatprep.subr.mxu0 %v435
    %741 = vmatpush1.msra.mxu0 %v434
    %742 = vmatprep.subr.mxu0 %v431
    %743 = vmatpush1.msra.mxu0 %v430
    %744 = vmatprep.subr.mxu0 %v427
    %745 = vmatpush1.msra.mxu0 %v426
    %746 = vmatprep.subr.mxu0 %v423
    %747 = vmatpush1.msra.mxu0 %v422
    %748 = vmatprep.subr.mxu0 %v419
    %749 = vmatpush1.msra.mxu0 %v418
    %750 = vmatprep.subr.mxu0 %v415
    %751 = vmatpush1.msra.mxu0 %v414
    %752 = vmatprep.subr.mxu0 %v411
    %753 = vmatpush1.msra.mxu0 %v410
    %754 = vmatprep.subr.mxu0 %v407
    %755 = vmatpush1.msra.mxu0 %v406
    %756 = vmatprep.subr.mxu0 %v403
    %757 = vmatpush1.msra.mxu0 %v402
    %758 = vmatprep.subr.mxu0 %v399
    %759 = vmatpush1.msra.mxu0 %v398
    %760 = vmatprep.subr.mxu0 %v395
    %761 = vmatpush1.msra.mxu0 %v394
    %762 = vmatprep.subr.mxu0 %v391
    %763 = vmatpush1.msra.mxu0 %v390
    %764 = vmatprep.subr.mxu0 %v387
    %765 = vmatpush1.msra.mxu0 %v386
    %766 = vmatprep.subr.mxu0 %v383
    %767 = vmatpush1.msra.mxu0 %v382
    %768 = vmatprep.subr.mxu0 0.0
    %769 = vmatpush2.msra.mxu0 0.0
    %770 = vmatprep.subr.mxu0 0.0
    %771 = vmatpush2.msra.mxu0 0.0
    %772 = vmatprep.subr.mxu0 0.0
    %773 = vmatpush2.msra.mxu0 0.0
    %774 = vmatprep.subr.mxu0 0.0
    %775 = vmatpush2.msra.mxu0 0.0
    %776 = vmatprep.subr.mxu0 0.0
    %777 = vmatpush2.msra.mxu0 0.0
    %778 = vmatprep.subr.mxu0 0.0
    %779 = vmatpush2.msra.mxu0 0.0
    %780 = vmatprep.subr.mxu0 0.0
    %781 = vmatpush2.msra.mxu0 0.0
    %782 = vmatprep.subr.mxu0 0.0
    %783 = vmatpush2.msra.mxu0 0.0
    %784 = vmatprep.subr.mxu0 0.0
    %785 = vmatpush2.msra.mxu0 0.0
    %786 = vmatprep.subr.mxu0 0.0
    %787 = vmatpush2.msra.mxu0 0.0
    %788 = vmatprep.subr.mxu0 0.0
    %789 = vmatpush2.msra.mxu0 0.0
    %790 = vmatprep.subr.mxu0 0.0
    %791 = vmatpush2.msra.mxu0 0.0
    %792 = vmatprep.subr.mxu0 0.0
    %793 = vmatpush2.msra.mxu0 0.0
    %794 = vmatprep.subr.mxu0 0.0
    %795 = vmatpush2.msra.mxu0 0.0
    %796 = vmatprep.subr.mxu0 0.0
    %797 = vmatpush2.msra.mxu0 0.0
    %798 = vmatprep.subr.mxu0 0.0
    %799 = vmatpush2.msra.mxu0 0.0
    %800 = vmatprep.mubr.f32.mxu0 0.0
    %801 = vmatmul.mubr.f32.gmra.mxu0 %v659
    %v802 = vpop.f32.mrf.mxu0
    %v803 = vadd.f32 0.0, %v802
    %v804 = vpop.f32.mrf.mxu0
    %v805 = vadd.f32 0.0, %v804
    %806 = vdwg.mxu0
    %v807 = vadd.f32 %v661, %v732
    %v808 = vadd.f32 %v662, %v734
    %v809 = vadd.f32 %v663, %v803
    %v810 = vadd.f32 %v664, %v805
    %v811 = vmul.f32 %v807, 2.0
    %v812 = vmul.f32 %v808, 2.0
    %v813 = vmul.f32 %v809, 2.0
    %v814 = vmul.f32 %v810, 2.0
    %v815 = vsel %vm457, %v811, %v807
    %v816 = vsel %vm458, %v812, %v808
    %v817 = vsel %vm459, %v813, %v809
    %v818 = vsel %vm460, %v814, %v810
    %v819 = vxor.u32 %v815, 2147483648
    %v820 = vxor.u32 %v816, 2147483648
    %v821 = vxor.u32 %v817, 2147483648
    %v822 = vxor.u32 %v818, 2147483648
    %v823 = vmul.f32 %v819, 1.442695
    %v824 = vpow.pop %v823
    %v825 = vmul.f32 %v820, 1.442695
    %v826 = vpow.pop %v825
    %v827 = vmul.f32 %v821, 1.442695
    %v828 = vpow.pop %v827
    %v829 = vmul.f32 %v822, 1.442695
    %v830 = vpow.pop %v829
    %v831 = vadd.f32 %v824, 1.0
    %v832 = vadd.f32 %v826, 1.0
    %v833 = vadd.f32 %v828, 1.0
    %v834 = vadd.f32 %v830, 1.0
    %v835 = vrcp.pop %v831
    %v836 = vmul.f32 1.0, %v835
    %v837 = vrcp.pop %v832
    %v838 = vmul.f32 1.0, %v837
    %v839 = vrcp.pop %v833
    %v840 = vmul.f32 1.0, %v839
    %v841 = vrcp.pop %v834
    %v842 = vmul.f32 1.0, %v841
    %v843 = vmul.f32 %v836, 2.0
    %v844 = vmul.f32 %v838, 2.0
    %v845 = vmul.f32 %v840, 2.0
    %v846 = vmul.f32 %v842, 2.0
    %v847 = vsub.f32 %v843, 1.0
    %v848 = vsub.f32 %v844, 1.0
    %v849 = vsub.f32 %v845, 1.0
    %v850 = vsub.f32 %v846, 1.0
    %v851 = vsel %vm457, %v847, %v836
    %v852 = vsel %vm458, %v848, %v838
    %v853 = vsel %vm459, %v849, %v840
    %v854 = vsel %vm460, %v850, %v842
    %v855 = vmul.f32 %v852, %v657
    %v856 = vmul.f32 %v851, %v853
    %v857 = vadd.f32 %v855, %v856
    %v858 = vtanh.pop %v857
    %v859 = vmul.f32 %v854, %v858
    %860 = vst [vmem:[#allocation3 + $0x8] sm:$0xff] %v859
    %v861 = vld [vmem:[#allocation2 + $0x40] sm:$0xff]
    %v862 = vld [vmem:[#allocation2 + $0x48] sm:$0xff]
    %v863 = vld [vmem:[#allocation2 + $0x50] sm:$0xff]
    %v864 = vld [vmem:[#allocation2 + $0x58] sm:$0xff]
    %865 = vmatprep.subr.mxu0 %v441
    %866 = vmatpush1.msra.mxu0 %v440
    %867 = vmatprep.subr.mxu0 %v437
    %868 = vmatpush1.msra.mxu0 %v436
    %869 = vmatprep.subr.mxu0 %v433
    %870 = vmatpush1.msra.mxu0 %v432
    %871 = vmatprep.subr.mxu0 %v429
    %872 = vmatpush1.msra.mxu0 %v428
    %873 = vmatprep.subr.mxu0 %v425
    %874 = vmatpush1.msra.mxu0 %v424
    %875 = vmatprep.subr.mxu0 %v421
    %876 = vmatpush1.msra.mxu0 %v420
    %877 = vmatprep.subr.mxu0 %v417
    %878 = vmatpush1.msra.mxu0 %v416
    %879 = vmatprep.subr.mxu0 %v413
    %880 = vmatpush1.msra.mxu0 %v412
    %881 = vmatprep.subr.mxu0 %v409
    %882 = vmatpush1.msra.mxu0 %v408
    %883 = vmatprep.subr.mxu0 %v405
    %884 = vmatpush1.msra.mxu0 %v404
    %885 = vmatprep.subr.mxu0 %v401
    %886 = vmatpush1.msra.mxu0 %v400
    %887 = vmatprep.subr.mxu0 %v397
    %888 = vmatpush1.msra.mxu0 %v396
    %889 = vmatprep.subr.mxu0 %v393
    %890 = vmatpush1.msra.mxu0 %v392
    %891 = vmatprep.subr.mxu0 %v389
    %892 = vmatpush1.msra.mxu0 %v388
    %893 = vmatprep.subr.mxu0 %v385
    %894 = vmatpush1.msra.mxu0 %v384
    %895 = vmatprep.subr.mxu0 %v381
    %896 = vmatpush1.msra.mxu0 %v380
    %897 = vmatprep.subr.mxu0 0.0
    %898 = vmatpush2.msra.mxu0 0.0
    %899 = vmatprep.subr.mxu0 0.0
    %900 = vmatpush2.msra.mxu0 0.0
    %901 = vmatprep.subr.mxu0 0.0
    %902 = vmatpush2.msra.mxu0 0.0
    %903 = vmatprep.subr.mxu0 0.0
    %904 = vmatpush2.msra.mxu0 0.0
    %905 = vmatprep.subr.mxu0 0.0
    %906 = vmatpush2.msra.mxu0 0.0
    %907 = vmatprep.subr.mxu0 0.0
    %908 = vmatpush2.msra.mxu0 0.0
    %909 = vmatprep.subr.mxu0 0.0
    %910 = vmatpush2.msra.mxu0 0.0
    %911 = vmatprep.subr.mxu0 0.0
    %912 = vmatpush2.msra.mxu0 0.0
    %913 = vmatprep.subr.mxu0 0.0
    %914 = vmatpush2.msra.mxu0 0.0
    %915 = vmatprep.subr.mxu0 0.0
    %916 = vmatpush2.msra.mxu0 0.0
    %917 = vmatprep.subr.mxu0 0.0
    %918 = vmatpush2.msra.mxu0 0.0
    %919 = vmatprep.subr.mxu0 0.0
    %920 = vmatpush2.msra.mxu0 0.0
    %921 = vmatprep.subr.mxu0 0.0
    %922 = vmatpush2.msra.mxu0 0.0
    %923 = vmatprep.subr.mxu0 0.0
    %924 = vmatpush2.msra.mxu0 0.0
    %925 = vmatprep.subr.mxu0 0.0
    %926 = vmatpush2.msra.mxu0 0.0
    %927 = vmatprep.subr.mxu0 0.0
    %928 = vmatpush2.msra.mxu0 0.0
    %929 = vmatprep.mubr.f32.mxu0 0.0
    %930 = vmatmul.mubr.f32.gmra.mxu0 %v859
    %v931 = vpop.f32.mrf.mxu0
    %v932 = vadd.f32 0.0, %v931
    %v933 = vpop.f32.mrf.mxu0
    %v934 = vadd.f32 0.0, %v933
    %935 = vdwg.mxu0
    %936 = vmatprep.subr.mxu0 %v443
    %937 = vmatpush1.msra.mxu0 %v442
    %938 = vmatprep.subr.mxu0 %v439
    %939 = vmatpush1.msra.mxu0 %v438
    %940 = vmatprep.subr.mxu0 %v435
    %941 = vmatpush1.msra.mxu0 %v434
    %942 = vmatprep.subr.mxu0 %v431
    %943 = vmatpush1.msra.mxu0 %v430
    %944 = vmatprep.subr.mxu0 %v427
    %945 = vmatpush1.msra.mxu0 %v426
    %946 = vmatprep.subr.mxu0 %v423
    %947 = vmatpush1.msra.mxu0 %v422
    %948 = vmatprep.subr.mxu0 %v419
    %949 = vmatpush1.msra.mxu0 %v418
    %950 = vmatprep.subr.mxu0 %v415
    %951 = vmatpush1.msra.mxu0 %v414
    %952 = vmatprep.subr.mxu0 %v411
    %953 = vmatpush1.msra.mxu0 %v410
    %954 = vmatprep.subr.mxu0 %v407
    %955 = vmatpush1.msra.mxu0 %v406
    %956 = vmatprep.subr.mxu0 %v403
    %957 = vmatpush1.msra.mxu0 %v402
    %958 = vmatprep.subr.mxu0 %v399
    %959 = vmatpush1.msra.mxu0 %v398
    %960 = vmatprep.subr.mxu0 %v395
    %961 = vmatpush1.msra.mxu0 %v394
    %962 = vmatprep.subr.mxu0 %v391
    %963 = vmatpush1.msra.mxu0 %v390
    %964 = vmatprep.subr.mxu0 %v387
    %965 = vmatpush1.msra.mxu0 %v386
    %966 = vmatprep.subr.mxu0 %v383
    %967 = vmatpush1.msra.mxu0 %v382
    %968 = vmatprep.subr.mxu0 0.0
    %969 = vmatpush2.msra.mxu0 0.0
    %970 = vmatprep.subr.mxu0 0.0
    %971 = vmatpush2.msra.mxu0 0.0
    %972 = vmatprep.subr.mxu0 0.0
    %973 = vmatpush2.msra.mxu0 0.0
    %974 = vmatprep.subr.mxu0 0.0
    %975 = vmatpush2.msra.mxu0 0.0
    %976 = vmatprep.subr.mxu0 0.0
    %977 = vmatpush2.msra.mxu0 0.0
    %978 = vmatprep.subr.mxu0 0.0
    %979 = vmatpush2.msra.mxu0 0.0
    %980 = vmatprep.subr.mxu0 0.0
    %981 = vmatpush2.msra.mxu0 0.0
    %982 = vmatprep.subr.mxu0 0.0
    %983 = vmatpush2.msra.mxu0 0.0
    %984 = vmatprep.subr.mxu0 0.0
    %985 = vmatpush2.msra.mxu0 0.0
    %986 = vmatprep.subr.mxu0 0.0
    %987 = vmatpush2.msra.mxu0 0.0
    %988 = vmatprep.subr.mxu0 0.0
    %989 = vmatpush2.msra.mxu0 0.0
    %990 = vmatprep.subr.mxu0 0.0
    %991 = vmatpush2.msra.mxu0 0.0
    %992 = vmatprep.subr.mxu0 0.0
    %993 = vmatpush2.msra.mxu0 0.0
    %994 = vmatprep.subr.mxu0 0.0
    %995 = vmatpush2.msra.mxu0 0.0
    %996 = vmatprep.subr.mxu0 0.0
    %997 = vmatpush2.msra.mxu0 0.0
    %998 = vmatprep.subr.mxu0 0.0
    %999 = vmatpush2.msra.mxu0 0.0
    %1000 = vmatprep.mubr.f32.mxu0 0.0
    %1001 = vmatmul.mubr.f32.gmra.mxu0 %v859
    %v1002 = vpop.f32.mrf.mxu0
    %v1003 = vadd.f32 0.0, %v1002
    %v1004 = vpop.f32.mrf.mxu0
    %v1005 = vadd.f32 0.0, %v1004
    %1006 = vdwg.mxu0
    %v1007 = vadd.f32 %v861, %v932
    %v1008 = vadd.f32 %v862, %v934
    %v1009 = vadd.f32 %v863, %v1003
    %v1010 = vadd.f32 %v864, %v1005
    %v1011 = vmul.f32 %v1007, 2.0
    %v1012 = vmul.f32 %v1008, 2.0
    %v1013 = vmul.f32 %v1009, 2.0
    %v1014 = vmul.f32 %v1010, 2.0
    %v1015 = vsel %vm457, %v1011, %v1007
    %v1016 = vsel %vm458, %v1012, %v1008
    %v1017 = vsel %vm459, %v1013, %v1009
    %v1018 = vsel %vm460, %v1014, %v1010
    %v1019 = vxor.u32 %v1015, 2147483648
    %v1020 = vxor.u32 %v1016, 2147483648
    %v1021 = vxor.u32 %v1017, 2147483648
    %v1022 = vxor.u32 %v1018, 2147483648
    %v1023 = vmul.f32 %v1019, 1.442695
    %v1024 = vpow.pop %v1023
    %v1025 = vmul.f32 %v1020, 1.442695
    %v1026 = vpow.pop %v1025
    %v1027 = vmul.f32 %v1021, 1.442695
    %v1028 = vpow.pop %v1027
    %v1029 = vmul.f32 %v1022, 1.442695
    %v1030 = vpow.pop %v1029
    %v1031 = vadd.f32 %v1024, 1.0
    %v1032 = vadd.f32 %v1026, 1.0
    %v1033 = vadd.f32 %v1028, 1.0
    %v1034 = vadd.f32 %v1030, 1.0
    %v1035 = vrcp.pop %v1031
    %v1036 = vmul.f32 1.0, %v1035
    %v1037 = vrcp.pop %v1032
    %v1038 = vmul.f32 1.0, %v1037
    %v1039 = vrcp.pop %v1033
    %v1040 = vmul.f32 1.0, %v1039
    %v1041 = vrcp.pop %v1034
    %v1042 = vmul.f32 1.0, %v1041
    %v1043 = vmul.f32 %v1036, 2.0
    %v1044 = vmul.f32 %v1038, 2.0
    %v1045 = vmul.f32 %v1040, 2.0
    %v1046 = vmul.f32 %v1042, 2.0
    %v1047 = vsub.f32 %v1043, 1.0
    %v1048 = vsub.f32 %v1044, 1.0
    %v1049 = vsub.f32 %v1045, 1.0
    %v1050 = vsub.f32 %v1046, 1.0
    %v1051 = vsel %vm457, %v1047, %v1036
    %v1052 = vsel %vm458, %v1048, %v1038
    %v1053 = vsel %vm459, %v1049, %v1040
    %v1054 = vsel %vm460, %v1050, %v1042
    %v1055 = vmul.f32 %v1052, %v857
    %v1056 = vmul.f32 %v1051, %v1053
    %v1057 = vadd.f32 %v1055, %v1056
    %v1058 = vtanh.pop %v1057
    %v1059 = vmul.f32 %v1054, %v1058
    %1060 = vst [vmem:[#allocation3 + $0x10] sm:$0xff] %v1059
    %v1061 = vld [vmem:[#allocation2 + $0x60] sm:$0xff]
    %v1062 = vld [vmem:[#allocation2 + $0x68] sm:$0xff]
    %v1063 = vld [vmem:[#allocation2 + $0x70] sm:$0xff]
    %v1064 = vld [vmem:[#allocation2 + $0x78] sm:$0xff]
    %1065 = vmatprep.subr.mxu0 %v441
    %1066 = vmatpush1.msra.mxu0 %v440
    %1067 = vmatprep.subr.mxu0 %v437
    %1068 = vmatpush1.msra.mxu0 %v436
    %1069 = vmatprep.subr.mxu0 %v433
    %1070 = vmatpush1.msra.mxu0 %v432
    %1071 = vmatprep.subr.mxu0 %v429
    %1072 = vmatpush1.msra.mxu0 %v428
    %1073 = vmatprep.subr.mxu0 %v425
    %1074 = vmatpush1.msra.mxu0 %v424
    %1075 = vmatprep.subr.mxu0 %v421
    %1076 = vmatpush1.msra.mxu0 %v420
    %1077 = vmatprep.subr.mxu0 %v417
    %1078 = vmatpush1.msra.mxu0 %v416
    %1079 = vmatprep.subr.mxu0 %v413
    %1080 = vmatpush1.msra.mxu0 %v412
    %1081 = vmatprep.subr.mxu0 %v409
    %1082 = vmatpush1.msra.mxu0 %v408
    %1083 = vmatprep.subr.mxu0 %v405
    %1084 = vmatpush1.msra.mxu0 %v404
    %1085 = vmatprep.subr.mxu0 %v401
    %1086 = vmatpush1.msra.mxu0 %v400
    %1087 = vmatprep.subr.mxu0 %v397
    %1088 = vmatpush1.msra.mxu0 %v396
    %1089 = vmatprep.subr.mxu0 %v393
    %1090 = vmatpush1.msra.mxu0 %v392
    %1091 = vmatprep.subr.mxu0 %v389
    %1092 = vmatpush1.msra.mxu0 %v388
    %1093 = vmatprep.subr.mxu0 %v385
    %1094 = vmatpush1.msra.mxu0 %v384
    %1095 = vmatprep.subr.mxu0 %v381
    %1096 = vmatpush1.msra.mxu0 %v380
    %1097 = vmatprep.subr.mxu0 0.0
    %1098 = vmatpush2.msra.mxu0 0.0
    %1099 = vmatprep.subr.mxu0 0.0
    %1100 = vmatpush2.msra.mxu0 0.0
    %1101 = vmatprep.subr.mxu0 0.0
    %1102 = vmatpush2.msra.mxu0 0.0
    %1103 = vmatprep.subr.mxu0 0.0
    %1104 = vmatpush2.msra.mxu0 0.0
    %1105 = vmatprep.subr.mxu0 0.0
    %1106 = vmatpush2.msra.mxu0 0.0
    %1107 = vmatprep.subr.mxu0 0.0
    %1108 = vmatpush2.msra.mxu0 0.0
    %1109 = vmatprep.subr.mxu0 0.0
    %1110 = vmatpush2.msra.mxu0 0.0
    %1111 = vmatprep.subr.mxu0 0.0
    %1112 = vmatpush2.msra.mxu0 0.0
    %1113 = vmatprep.subr.mxu0 0.0
    %1114 = vmatpush2.msra.mxu0 0.0
    %1115 = vmatprep.subr.mxu0 0.0
    %1116 = vmatpush2.msra.mxu0 0.0
    %1117 = vmatprep.subr.mxu0 0.0
    %1118 = vmatpush2.msra.mxu0 0.0
    %1119 = vmatprep.subr.mxu0 0.0
    %1120 = vmatpush2.msra.mxu0 0.0
    %1121 = vmatprep.subr.mxu0 0.0
    %1122 = vmatpush2.msra.mxu0 0.0
    %1123 = vmatprep.subr.mxu0 0.0
    %1124 = vmatpush2.msra.mxu0 0.0
    %1125 = vmatprep.subr.mxu0 0.0
    %1126 = vmatpush2.msra.mxu0 0.0
    %1127 = vmatprep.subr.mxu0 0.0
    %1128 = vmatpush2.msra.mxu0 0.0
    %1129 = vmatprep.mubr.f32.mxu0 0.0
    %1130 = vmatmul.mubr.f32.gmra.mxu0 %v1059
    %v1131 = vpop.f32.mrf.mxu0
    %v1132 = vadd.f32 0.0, %v1131
    %v1133 = vpop.f32.mrf.mxu0
    %v1134 = vadd.f32 0.0, %v1133
    %1135 = vdwg.mxu0
    %1136 = vmatprep.subr.mxu0 %v443
    %1137 = vmatpush1.msra.mxu0 %v442
    %1138 = vmatprep.subr.mxu0 %v439
    %1139 = vmatpush1.msra.mxu0 %v438
    %1140 = vmatprep.subr.mxu0 %v435
    %1141 = vmatpush1.msra.mxu0 %v434
    %1142 = vmatprep.subr.mxu0 %v431
    %1143 = vmatpush1.msra.mxu0 %v430
    %1144 = vmatprep.subr.mxu0 %v427
    %1145 = vmatpush1.msra.mxu0 %v426
    %1146 = vmatprep.subr.mxu0 %v423
    %1147 = vmatpush1.msra.mxu0 %v422
    %1148 = vmatprep.subr.mxu0 %v419
    %1149 = vmatpush1.msra.mxu0 %v418
    %1150 = vmatprep.subr.mxu0 %v415
    %1151 = vmatpush1.msra.mxu0 %v414
    %1152 = vmatprep.subr.mxu0 %v411
    %1153 = vmatpush1.msra.mxu0 %v410
    %1154 = vmatprep.subr.mxu0 %v407
    %1155 = vmatpush1.msra.mxu0 %v406
    %1156 = vmatprep.subr.mxu0 %v403
    %1157 = vmatpush1.msra.mxu0 %v402
    %1158 = vmatprep.subr.mxu0 %v399
    %1159 = vmatpush1.msra.mxu0 %v398
    %1160 = vmatprep.subr.mxu0 %v395
    %1161 = vmatpush1.msra.mxu0 %v394
    %1162 = vmatprep.subr.mxu0 %v391
    %1163 = vmatpush1.msra.mxu0 %v390
    %1164 = vmatprep.subr.mxu0 %v387
    %1165 = vmatpush1.msra.mxu0 %v386
    %1166 = vmatprep.subr.mxu0 %v383
    %1167 = vmatpush1.msra.mxu0 %v382
    %1168 = vmatprep.subr.mxu0 0.0
    %1169 = vmatpush2.msra.mxu0 0.0
    %1170 = vmatprep.subr.mxu0 0.0
    %1171 = vmatpush2.msra.mxu0 0.0
    %1172 = vmatprep.subr.mxu0 0.0
    %1173 = vmatpush2.msra.mxu0 0.0
    %1174 = vmatprep.subr.mxu0 0.0
    %1175 = vmatpush2.msra.mxu0 0.0
    %1176 = vmatprep.subr.mxu0 0.0
    %1177 = vmatpush2.msra.mxu0 0.0
    %1178 = vmatprep.subr.mxu0 0.0
    %1179 = vmatpush2.msra.mxu0 0.0
    %1180 = vmatprep.subr.mxu0 0.0
    %1181 = vmatpush2.msra.mxu0 0.0
    %1182 = vmatprep.subr.mxu0 0.0
    %1183 = vmatpush2.msra.mxu0 0.0
    %1184 = vmatprep.subr.mxu0 0.0
    %1185 = vmatpush2.msra.mxu0 0.0
    %1186 = vmatprep.subr.mxu0 0.0
    %1187 = vmatpush2.msra.mxu0 0.0
    %1188 = vmatprep.subr.mxu0 0.0
    %1189 = vmatpush2.msra.mxu0 0.0
    %1190 = vmatprep.subr.mxu0 0.0
    %1191 = vmatpush2.msra.mxu0 0.0
    %1192 = vmatprep.subr.mxu0 0.0
    %1193 = vmatpush2.msra.mxu0 0.0
    %1194 = vmatprep.subr.mxu0 0.0
    %1195 = vmatpush2.msra.mxu0 0.0
    %1196 = vmatprep.subr.mxu0 0.0
    %1197 = vmatpush2.msra.mxu0 0.0
    %1198 = vmatprep.subr.mxu0 0.0
    %1199 = vmatpush2.msra.mxu0 0.0
    %1200 = vmatprep.mubr.f32.mxu0 0.0
    %1201 = vmatmul.mubr.f32.gmra.mxu0 %v1059
    %v1202 = vpop.f32.mrf.mxu0
    %v1203 = vadd.f32 0.0, %v1202
    %v1204 = vpop.f32.mrf.mxu0
    %v1205 = vadd.f32 0.0, %v1204
    %1206 = vdwg.mxu0
    %v1207 = vadd.f32 %v1061, %v1132
    %v1208 = vadd.f32 %v1062, %v1134
    %v1209 = vadd.f32 %v1063, %v1203
    %v1210 = vadd.f32 %v1064, %v1205
    %v1211 = vmul.f32 %v1207, 2.0
    %v1212 = vmul.f32 %v1208, 2.0
    %v1213 = vmul.f32 %v1209, 2.0
    %v1214 = vmul.f32 %v1210, 2.0
    %v1215 = vsel %vm457, %v1211, %v1207
    %v1216 = vsel %vm458, %v1212, %v1208
    %v1217 = vsel %vm459, %v1213, %v1209
    %v1218 = vsel %vm460, %v1214, %v1210
    %v1219 = vxor.u32 %v1215, 2147483648
    %v1220 = vxor.u32 %v1216, 2147483648
    %v1221 = vxor.u32 %v1217, 2147483648
    %v1222 = vxor.u32 %v1218, 2147483648
    %v1223 = vmul.f32 %v1219, 1.442695
    %v1224 = vpow.pop %v1223
    %v1225 = vmul.f32 %v1220, 1.442695
    %v1226 = vpow.pop %v1225
    %v1227 = vmul.f32 %v1221, 1.442695
    %v1228 = vpow.pop %v1227
    %v1229 = vmul.f32 %v1222, 1.442695
    %v1230 = vpow.pop %v1229
    %v1231 = vadd.f32 %v1224, 1.0
    %v1232 = vadd.f32 %v1226, 1.0
    %v1233 = vadd.f32 %v1228, 1.0
    %v1234 = vadd.f32 %v1230, 1.0
    %v1235 = vrcp.pop %v1231
    %v1236 = vmul.f32 1.0, %v1235
    %v1237 = vrcp.pop %v1232
    %v1238 = vmul.f32 1.0, %v1237
    %v1239 = vrcp.pop %v1233
    %v1240 = vmul.f32 1.0, %v1239
    %v1241 = vrcp.pop %v1234
    %v1242 = vmul.f32 1.0, %v1241
    %v1243 = vmul.f32 %v1236, 2.0
    %v1244 = vmul.f32 %v1238, 2.0
    %v1245 = vmul.f32 %v1240, 2.0
    %v1246 = vmul.f32 %v1242, 2.0
    %v1247 = vsub.f32 %v1243, 1.0
    %v1248 = vsub.f32 %v1244, 1.0
    %v1249 = vsub.f32 %v1245, 1.0
    %v1250 = vsub.f32 %v1246, 1.0
    %v1251 = vsel %vm457, %v1247, %v1236
    %v1252 = vsel %vm458, %v1248, %v1238
    %v1253 = vsel %vm459, %v1249, %v1240
    %v1254 = vsel %vm460, %v1250, %v1242
    %v1255 = vmul.f32 %v1252, %v1057
    %v1256 = vmul.f32 %v1251, %v1253
    %v1257 = vadd.f32 %v1255, %v1256
    %v1258 = vtanh.pop %v1257
    %v1259 = vmul.f32 %v1254, %v1258
    %1260 = vst [vmem:[#allocation3 + $0x18] sm:$0xff] %v1259
    %v1261 = vld [vmem:[#allocation2 + $0x80] sm:$0xff]
    %v1262 = vld [vmem:[#allocation2 + $0x88] sm:$0xff]
    %v1263 = vld [vmem:[#allocation2 + $0x90] sm:$0xff]
    %v1264 = vld [vmem:[#allocation2 + $0x98] sm:$0xff]
    %1265 = vmatprep.subr.mxu0 %v441
    %1266 = vmatpush1.msra.mxu0 %v440
    %1267 = vmatprep.subr.mxu0 %v437
    %1268 = vmatpush1.msra.mxu0 %v436
    %1269 = vmatprep.subr.mxu0 %v433
    %1270 = vmatpush1.msra.mxu0 %v432
    %1271 = vmatprep.subr.mxu0 %v429
    %1272 = vmatpush1.msra.mxu0 %v428
    %1273 = vmatprep.subr.mxu0 %v425
    %1274 = vmatpush1.msra.mxu0 %v424
    %1275 = vmatprep.subr.mxu0 %v421
    %1276 = vmatpush1.msra.mxu0 %v420
    %1277 = vmatprep.subr.mxu0 %v417
    %1278 = vmatpush1.msra.mxu0 %v416
    %1279 = vmatprep.subr.mxu0 %v413
    %1280 = vmatpush1.msra.mxu0 %v412
    %1281 = vmatprep.subr.mxu0 %v409
    %1282 = vmatpush1.msra.mxu0 %v408
    %1283 = vmatprep.subr.mxu0 %v405
    %1284 = vmatpush1.msra.mxu0 %v404
    %1285 = vmatprep.subr.mxu0 %v401
    %1286 = vmatpush1.msra.mxu0 %v400
    %1287 = vmatprep.subr.mxu0 %v397
    %1288 = vmatpush1.msra.mxu0 %v396
    %1289 = vmatprep.subr.mxu0 %v393
    %1290 = vmatpush1.msra.mxu0 %v392
    %1291 = vmatprep.subr.mxu0 %v389
    %1292 = vmatpush1.msra.mxu0 %v388
    %1293 = vmatprep.subr.mxu0 %v385
    %1294 = vmatpush1.msra.mxu0 %v384
    %1295 = vmatprep.subr.mxu0 %v381
    %1296 = vmatpush1.msra.mxu0 %v380
    %1297 = vmatprep.subr.mxu0 0.0
    %1298 = vmatpush2.msra.mxu0 0.0
    %1299 = vmatprep.subr.mxu0 0.0
    %1300 = vmatpush2.msra.mxu0 0.0
    %1301 = vmatprep.subr.mxu0 0.0
    %1302 = vmatpush2.msra.mxu0 0.0
    %1303 = vmatprep.subr.mxu0 0.0
    %1304 = vmatpush2.msra.mxu0 0.0
    %1305 = vmatprep.subr.mxu0 0.0
    %1306 = vmatpush2.msra.mxu0 0.0
    %1307 = vmatprep.subr.mxu0 0.0
    %1308 = vmatpush2.msra.mxu0 0.0
    %1309 = vmatprep.subr.mxu0 0.0
    %1310 = vmatpush2.msra.mxu0 0.0
    %1311 = vmatprep.subr.mxu0 0.0
    %1312 = vmatpush2.msra.mxu0 0.0
    %1313 = vmatprep.subr.mxu0 0.0
    %1314 = vmatpush2.msra.mxu0 0.0
    %1315 = vmatprep.subr.mxu0 0.0
    %1316 = vmatpush2.msra.mxu0 0.0
    %1317 = vmatprep.subr.mxu0 0.0
    %1318 = vmatpush2.msra.mxu0 0.0
    %1319 = vmatprep.subr.mxu0 0.0
    %1320 = vmatpush2.msra.mxu0 0.0
    %1321 = vmatprep.subr.mxu0 0.0
    %1322 = vmatpush2.msra.mxu0 0.0
    %1323 = vmatprep.subr.mxu0 0.0
    %1324 = vmatpush2.msra.mxu0 0.0
    %1325 = vmatprep.subr.mxu0 0.0
    %1326 = vmatpush2.msra.mxu0 0.0
    %1327 = vmatprep.subr.mxu0 0.0
    %1328 = vmatpush2.msra.mxu0 0.0
    %1329 = vmatprep.mubr.f32.mxu0 0.0
    %1330 = vmatmul.mubr.f32.gmra.mxu0 %v1259
    %v1331 = vpop.f32.mrf.mxu0
    %v1332 = vadd.f32 0.0, %v1331
    %v1333 = vpop.f32.mrf.mxu0
    %v1334 = vadd.f32 0.0, %v1333
    %1335 = vdwg.mxu0
    %1336 = vmatprep.subr.mxu0 %v443
    %1337 = vmatpush1.msra.mxu0 %v442
    %1338 = vmatprep.subr.mxu0 %v439
    %1339 = vmatpush1.msra.mxu0 %v438
    %1340 = vmatprep.subr.mxu0 %v435
    %1341 = vmatpush1.msra.mxu0 %v434
    %1342 = vmatprep.subr.mxu0 %v431
    %1343 = vmatpush1.msra.mxu0 %v430
    %1344 = vmatprep.subr.mxu0 %v427
    %1345 = vmatpush1.msra.mxu0 %v426
    %1346 = vmatprep.subr.mxu0 %v423
    %1347 = vmatpush1.msra.mxu0 %v422
    %1348 = vmatprep.subr.mxu0 %v419
    %1349 = vmatpush1.msra.mxu0 %v418
    %1350 = vmatprep.subr.mxu0 %v415
    %1351 = vmatpush1.msra.mxu0 %v414
    %1352 = vmatprep.subr.mxu0 %v411
    %1353 = vmatpush1.msra.mxu0 %v410
    %1354 = vmatprep.subr.mxu0 %v407
    %1355 = vmatpush1.msra.mxu0 %v406
    %1356 = vmatprep.subr.mxu0 %v403
    %1357 = vmatpush1.msra.mxu0 %v402
    %1358 = vmatprep.subr.mxu0 %v399
    %1359 = vmatpush1.msra.mxu0 %v398
    %1360 = vmatprep.subr.mxu0 %v395
    %1361 = vmatpush1.msra.mxu0 %v394
    %1362 = vmatprep.subr.mxu0 %v391
    %1363 = vmatpush1.msra.mxu0 %v390
    %1364 = vmatprep.subr.mxu0 %v387
    %1365 = vmatpush1.msra.mxu0 %v386
    %1366 = vmatprep.subr.mxu0 %v383
    %1367 = vmatpush1.msra.mxu0 %v382
    %1368 = vmatprep.subr.mxu0 0.0
    %1369 = vmatpush2.msra.mxu0 0.0
    %1370 = vmatprep.subr.mxu0 0.0
    %1371 = vmatpush2.msra.mxu0 0.0
    %1372 = vmatprep.subr.mxu0 0.0
    %1373 = vmatpush2.msra.mxu0 0.0
    %1374 = vmatprep.subr.mxu0 0.0
    %1375 = vmatpush2.msra.mxu0 0.0
    %1376 = vmatprep.subr.mxu0 0.0
    %1377 = vmatpush2.msra.mxu0 0.0
    %1378 = vmatprep.subr.mxu0 0.0
    %1379 = vmatpush2.msra.mxu0 0.0
    %1380 = vmatprep.subr.mxu0 0.0
    %1381 = vmatpush2.msra.mxu0 0.0
    %1382 = vmatprep.subr.mxu0 0.0
    %1383 = vmatpush2.msra.mxu0 0.0
    %1384 = vmatprep.subr.mxu0 0.0
    %1385 = vmatpush2.msra.mxu0 0.0
    %1386 = vmatprep.subr.mxu0 0.0
    %1387 = vmatpush2.msra.mxu0 0.0
    %1388 = vmatprep.subr.mxu0 0.0
    %1389 = vmatpush2.msra.mxu0 0.0
    %1390 = vmatprep.subr.mxu0 0.0
    %1391 = vmatpush2.msra.mxu0 0.0
    %1392 = vmatprep.subr.mxu0 0.0
    %1393 = vmatpush2.msra.mxu0 0.0
    %1394 = vmatprep.subr.mxu0 0.0
    %1395 = vmatpush2.msra.mxu0 0.0
    %1396 = vmatprep.subr.mxu0 0.0
    %1397 = vmatpush2.msra.mxu0 0.0
    %1398 = vmatprep.subr.mxu0 0.0
    %1399 = vmatpush2.msra.mxu0 0.0
    %1400 = vmatprep.mubr.f32.mxu0 0.0
    %1401 = vmatmul.mubr.f32.gmra.mxu0 %v1259
    %v1402 = vpop.f32.mrf.mxu0
    %v1403 = vadd.f32 0.0, %v1402
    %v1404 = vpop.f32.mrf.mxu0
    %v1405 = vadd.f32 0.0, %v1404
    %1406 = vdwg.mxu0
    %v1407 = vadd.f32 %v1261, %v1332
    %v1408 = vadd.f32 %v1262, %v1334
    %v1409 = vadd.f32 %v1263, %v1403
    %v1410 = vadd.f32 %v1264, %v1405
    %v1411 = vmul.f32 %v1407, 2.0
    %v1412 = vmul.f32 %v1408, 2.0
    %v1413 = vmul.f32 %v1409, 2.0
    %v1414 = vmul.f32 %v1410, 2.0
    %v1415 = vsel %vm457, %v1411, %v1407
    %v1416 = vsel %vm458, %v1412, %v1408
    %v1417 = vsel %vm459, %v1413, %v1409
    %v1418 = vsel %vm460, %v1414, %v1410
    %v1419 = vxor.u32 %v1415, 2147483648
    %v1420 = vxor.u32 %v1416, 2147483648
    %v1421 = vxor.u32 %v1417, 2147483648
    %v1422 = vxor.u32 %v1418, 2147483648
    %v1423 = vmul.f32 %v1419, 1.442695
    %v1424 = vpow.pop %v1423
    %v1425 = vmul.f32 %v1420, 1.442695
    %v1426 = vpow.pop %v1425
    %v1427 = vmul.f32 %v1421, 1.442695
    %v1428 = vpow.pop %v1427
    %v1429 = vmul.f32 %v1422, 1.442695
    %v1430 = vpow.pop %v1429
    %v1431 = vadd.f32 %v1424, 1.0
    %v1432 = vadd.f32 %v1426, 1.0
    %v1433 = vadd.f32 %v1428, 1.0
    %v1434 = vadd.f32 %v1430, 1.0
    %v1435 = vrcp.pop %v1431
    %v1436 = vmul.f32 1.0, %v1435
    %v1437 = vrcp.pop %v1432
    %v1438 = vmul.f32 1.0, %v1437
    %v1439 = vrcp.pop %v1433
    %v1440 = vmul.f32 1.0, %v1439
    %v1441 = vrcp.pop %v1434
    %v1442 = vmul.f32 1.0, %v1441
    %v1443 = vmul.f32 %v1436, 2.0
    %v1444 = vmul.f32 %v1438, 2.0
    %v1445 = vmul.f32 %v1440, 2.0
    %v1446 = vmul.f32 %v1442, 2.0
    %v1447 = vsub.f32 %v1443, 1.0
    %v1448 = vsub.f32 %v1444, 1.0
    %v1449 = vsub.f32 %v1445, 1.0
    %v1450 = vsub.f32 %v1446, 1.0
    %v1451 = vsel %vm457, %v1447, %v1436
    %v1452 = vsel %vm458, %v1448, %v1438
    %v1453 = vsel %vm459, %v1449, %v1440
    %v1454 = vsel %vm460, %v1450, %v1442
    %v1455 = vmul.f32 %v1452, %v1257
    %v1456 = vmul.f32 %v1451, %v1453
    %v1457 = vadd.f32 %v1455, %v1456
    %v1458 = vtanh.pop %v1457
    %v1459 = vmul.f32 %v1454, %v1458
    %1460 = vst [vmem:[#allocation3 + $0x20] sm:$0xff] %v1459
    %v1461 = vld [vmem:[#allocation2 + $0xa0] sm:$0xff]
    %v1462 = vld [vmem:[#allocation2 + $0xa8] sm:$0xff]
    %v1463 = vld [vmem:[#allocation2 + $0xb0] sm:$0xff]
    %v1464 = vld [vmem:[#allocation2 + $0xb8] sm:$0xff]
    %1465 = vmatprep.subr.mxu0 %v441
    %1466 = vmatpush1.msra.mxu0 %v440
    %1467 = vmatprep.subr.mxu0 %v437
    %1468 = vmatpush1.msra.mxu0 %v436
    %1469 = vmatprep.subr.mxu0 %v433
    %1470 = vmatpush1.msra.mxu0 %v432
    %1471 = vmatprep.subr.mxu0 %v429
    %1472 = vmatpush1.msra.mxu0 %v428
    %1473 = vmatprep.subr.mxu0 %v425
    %1474 = vmatpush1.msra.mxu0 %v424
    %1475 = vmatprep.subr.mxu0 %v421
    %1476 = vmatpush1.msra.mxu0 %v420
    %1477 = vmatprep.subr.mxu0 %v417
    %1478 = vmatpush1.msra.mxu0 %v416
    %1479 = vmatprep.subr.mxu0 %v413
    %1480 = vmatpush1.msra.mxu0 %v412
    %1481 = vmatprep.subr.mxu0 %v409
    %1482 = vmatpush1.msra.mxu0 %v408
    %1483 = vmatprep.subr.mxu0 %v405
    %1484 = vmatpush1.msra.mxu0 %v404
    %1485 = vmatprep.subr.mxu0 %v401
    %1486 = vmatpush1.msra.mxu0 %v400
    %1487 = vmatprep.subr.mxu0 %v397
    %1488 = vmatpush1.msra.mxu0 %v396
    %1489 = vmatprep.subr.mxu0 %v393
    %1490 = vmatpush1.msra.mxu0 %v392
    %1491 = vmatprep.subr.mxu0 %v389
    %1492 = vmatpush1.msra.mxu0 %v388
    %1493 = vmatprep.subr.mxu0 %v385
    %1494 = vmatpush1.msra.mxu0 %v384
    %1495 = vmatprep.subr.mxu0 %v381
    %1496 = vmatpush1.msra.mxu0 %v380
    %1497 = vmatprep.subr.mxu0 0.0
    %1498 = vmatpush2.msra.mxu0 0.0
    %1499 = vmatprep.subr.mxu0 0.0
    %1500 = vmatpush2.msra.mxu0 0.0
    %1501 = vmatprep.subr.mxu0 0.0
    %1502 = vmatpush2.msra.mxu0 0.0
    %1503 = vmatprep.subr.mxu0 0.0
    %1504 = vmatpush2.msra.mxu0 0.0
    %1505 = vmatprep.subr.mxu0 0.0
    %1506 = vmatpush2.msra.mxu0 0.0
    %1507 = vmatprep.subr.mxu0 0.0
    %1508 = vmatpush2.msra.mxu0 0.0
    %1509 = vmatprep.subr.mxu0 0.0
    %1510 = vmatpush2.msra.mxu0 0.0
    %1511 = vmatprep.subr.mxu0 0.0
    %1512 = vmatpush2.msra.mxu0 0.0
    %1513 = vmatprep.subr.mxu0 0.0
    %1514 = vmatpush2.msra.mxu0 0.0
    %1515 = vmatprep.subr.mxu0 0.0
    %1516 = vmatpush2.msra.mxu0 0.0
    %1517 = vmatprep.subr.mxu0 0.0
    %1518 = vmatpush2.msra.mxu0 0.0
    %1519 = vmatprep.subr.mxu0 0.0
    %1520 = vmatpush2.msra.mxu0 0.0
    %1521 = vmatprep.subr.mxu0 0.0
    %1522 = vmatpush2.msra.mxu0 0.0
    %1523 = vmatprep.subr.mxu0 0.0
    %1524 = vmatpush2.msra.mxu0 0.0
    %1525 = vmatprep.subr.mxu0 0.0
    %1526 = vmatpush2.msra.mxu0 0.0
    %1527 = vmatprep.subr.mxu0 0.0
    %1528 = vmatpush2.msra.mxu0 0.0
    %1529 = vmatprep.mubr.f32.mxu0 0.0
    %1530 = vmatmul.mubr.f32.gmra.mxu0 %v1459
    %v1531 = vpop.f32.mrf.mxu0
    %v1532 = vadd.f32 0.0, %v1531
    %v1533 = vpop.f32.mrf.mxu0
    %v1534 = vadd.f32 0.0, %v1533
    %1535 = vdwg.mxu0
    %1536 = vmatprep.subr.mxu0 %v443
    %1537 = vmatpush1.msra.mxu0 %v442
    %1538 = vmatprep.subr.mxu0 %v439
    %1539 = vmatpush1.msra.mxu0 %v438
    %1540 = vmatprep.subr.mxu0 %v435
    %1541 = vmatpush1.msra.mxu0 %v434
    %1542 = vmatprep.subr.mxu0 %v431
    %1543 = vmatpush1.msra.mxu0 %v430
    %1544 = vmatprep.subr.mxu0 %v427
    %1545 = vmatpush1.msra.mxu0 %v426
    %1546 = vmatprep.subr.mxu0 %v423
    %1547 = vmatpush1.msra.mxu0 %v422
    %1548 = vmatprep.subr.mxu0 %v419
    %1549 = vmatpush1.msra.mxu0 %v418
    %1550 = vmatprep.subr.mxu0 %v415
    %1551 = vmatpush1.msra.mxu0 %v414
    %1552 = vmatprep.subr.mxu0 %v411
    %1553 = vmatpush1.msra.mxu0 %v410
    %1554 = vmatprep.subr.mxu0 %v407
    %1555 = vmatpush1.msra.mxu0 %v406
    %1556 = vmatprep.subr.mxu0 %v403
    %1557 = vmatpush1.msra.mxu0 %v402
    %1558 = vmatprep.subr.mxu0 %v399
    %1559 = vmatpush1.msra.mxu0 %v398
    %1560 = vmatprep.subr.mxu0 %v395
    %1561 = vmatpush1.msra.mxu0 %v394
    %1562 = vmatprep.subr.mxu0 %v391
    %1563 = vmatpush1.msra.mxu0 %v390
    %1564 = vmatprep.subr.mxu0 %v387
    %1565 = vmatpush1.msra.mxu0 %v386
    %1566 = vmatprep.subr.mxu0 %v383
    %1567 = vmatpush1.msra.mxu0 %v382
    %1568 = vmatprep.subr.mxu0 0.0
    %1569 = vmatpush2.msra.mxu0 0.0
    %1570 = vmatprep.subr.mxu0 0.0
    %1571 = vmatpush2.msra.mxu0 0.0
    %1572 = vmatprep.subr.mxu0 0.0
    %1573 = vmatpush2.msra.mxu0 0.0
    %1574 = vmatprep.subr.mxu0 0.0
    %1575 = vmatpush2.msra.mxu0 0.0
    %1576 = vmatprep.subr.mxu0 0.0
    %1577 = vmatpush2.msra.mxu0 0.0
    %1578 = vmatprep.subr.mxu0 0.0
    %1579 = vmatpush2.msra.mxu0 0.0
    %1580 = vmatprep.subr.mxu0 0.0
    %1581 = vmatpush2.msra.mxu0 0.0
    %1582 = vmatprep.subr.mxu0 0.0
    %1583 = vmatpush2.msra.mxu0 0.0
    %1584 = vmatprep.subr.mxu0 0.0
    %1585 = vmatpush2.msra.mxu0 0.0
    %1586 = vmatprep.subr.mxu0 0.0
    %1587 = vmatpush2.msra.mxu0 0.0
    %1588 = vmatprep.subr.mxu0 0.0
    %1589 = vmatpush2.msra.mxu0 0.0
    %1590 = vmatprep.subr.mxu0 0.0
    %1591 = vmatpush2.msra.mxu0 0.0
    %1592 = vmatprep.subr.mxu0 0.0
    %1593 = vmatpush2.msra.mxu0 0.0
    %1594 = vmatprep.subr.mxu0 0.0
    %1595 = vmatpush2.msra.mxu0 0.0
    %1596 = vmatprep.subr.mxu0 0.0
    %1597 = vmatpush2.msra.mxu0 0.0
    %1598 = vmatprep.subr.mxu0 0.0
    %1599 = vmatpush2.msra.mxu0 0.0
    %1600 = vmatprep.mubr.f32.mxu0 0.0
    %1601 = vmatmul.mubr.f32.gmra.mxu0 %v1459
    %v1602 = vpop.f32.mrf.mxu0
    %v1603 = vadd.f32 0.0, %v1602
    %v1604 = vpop.f32.mrf.mxu0
    %v1605 = vadd.f32 0.0, %v1604
    %1606 = vdwg.mxu0
    %v1607 = vadd.f32 %v1461, %v1532
    %v1608 = vadd.f32 %v1462, %v1534
    %v1609 = vadd.f32 %v1463, %v1603
    %v1610 = vadd.f32 %v1464, %v1605
    %v1611 = vmul.f32 %v1607, 2.0
    %v1612 = vmul.f32 %v1608, 2.0
    %v1613 = vmul.f32 %v1609, 2.0
    %v1614 = vmul.f32 %v1610, 2.0
    %v1615 = vsel %vm457, %v1611, %v1607
    %v1616 = vsel %vm458, %v1612, %v1608
    %v1617 = vsel %vm459, %v1613, %v1609
    %v1618 = vsel %vm460, %v1614, %v1610
    %v1619 = vxor.u32 %v1615, 2147483648
    %v1620 = vxor.u32 %v1616, 2147483648
    %v1621 = vxor.u32 %v1617, 2147483648
    %v1622 = vxor.u32 %v1618, 2147483648
    %v1623 = vmul.f32 %v1619, 1.442695
    %v1624 = vpow.pop %v1623
    %v1625 = vmul.f32 %v1620, 1.442695
    %v1626 = vpow.pop %v1625
    %v1627 = vmul.f32 %v1621, 1.442695
    %v1628 = vpow.pop %v1627
    %v1629 = vmul.f32 %v1622, 1.442695
    %v1630 = vpow.pop %v1629
    %v1631 = vadd.f32 %v1624, 1.0
    %v1632 = vadd.f32 %v1626, 1.0
    %v1633 = vadd.f32 %v1628, 1.0
    %v1634 = vadd.f32 %v1630, 1.0
    %v1635 = vrcp.pop %v1631
    %v1636 = vmul.f32 1.0, %v1635
    %v1637 = vrcp.pop %v1632
    %v1638 = vmul.f32 1.0, %v1637
    %v1639 = vrcp.pop %v1633
    %v1640 = vmul.f32 1.0, %v1639
    %v1641 = vrcp.pop %v1634
    %v1642 = vmul.f32 1.0, %v1641
    %v1643 = vmul.f32 %v1636, 2.0
    %v1644 = vmul.f32 %v1638, 2.0
    %v1645 = vmul.f32 %v1640, 2.0
    %v1646 = vmul.f32 %v1642, 2.0
    %v1647 = vsub.f32 %v1643, 1.0
    %v1648 = vsub.f32 %v1644, 1.0
    %v1649 = vsub.f32 %v1645, 1.0
    %v1650 = vsub.f32 %v1646, 1.0
    %v1651 = vsel %vm457, %v1647, %v1636
    %v1652 = vsel %vm458, %v1648, %v1638
    %v1653 = vsel %vm459, %v1649, %v1640
    %v1654 = vsel %vm460, %v1650, %v1642
    %v1655 = vmul.f32 %v1652, %v1457
    %v1656 = vmul.f32 %v1651, %v1653
    %v1657 = vadd.f32 %v1655, %v1656
    %v1658 = vtanh.pop %v1657
    %v1659 = vmul.f32 %v1654, %v1658
    %1660 = vst [vmem:[#allocation3 + $0x28] sm:$0xff] %v1659
    %v1661 = vld [vmem:[#allocation2 + $0xc0] sm:$0xff]
    %v1662 = vld [vmem:[#allocation2 + $0xc8] sm:$0xff]
    %v1663 = vld [vmem:[#allocation2 + $0xd0] sm:$0xff]
    %v1664 = vld [vmem:[#allocation2 + $0xd8] sm:$0xff]
    %1665 = vmatprep.subr.mxu0 %v441
    %1666 = vmatpush1.msra.mxu0 %v440
    %1667 = vmatprep.subr.mxu0 %v437
    %1668 = vmatpush1.msra.mxu0 %v436
    %1669 = vmatprep.subr.mxu0 %v433
    %1670 = vmatpush1.msra.mxu0 %v432
    %1671 = vmatprep.subr.mxu0 %v429
    %1672 = vmatpush1.msra.mxu0 %v428
    %1673 = vmatprep.subr.mxu0 %v425
    %1674 = vmatpush1.msra.mxu0 %v424
    %1675 = vmatprep.subr.mxu0 %v421
    %1676 = vmatpush1.msra.mxu0 %v420
    %1677 = vmatprep.subr.mxu0 %v417
    %1678 = vmatpush1.msra.mxu0 %v416
    %1679 = vmatprep.subr.mxu0 %v413
    %1680 = vmatpush1.msra.mxu0 %v412
    %1681 = vmatprep.subr.mxu0 %v409
    %1682 = vmatpush1.msra.mxu0 %v408
    %1683 = vmatprep.subr.mxu0 %v405
    %1684 = vmatpush1.msra.mxu0 %v404
    %1685 = vmatprep.subr.mxu0 %v401
    %1686 = vmatpush1.msra.mxu0 %v400
    %1687 = vmatprep.subr.mxu0 %v397
    %1688 = vmatpush1.msra.mxu0 %v396
    %1689 = vmatprep.subr.mxu0 %v393
    %1690 = vmatpush1.msra.mxu0 %v392
    %1691 = vmatprep.subr.mxu0 %v389
    %1692 = vmatpush1.msra.mxu0 %v388
    %1693 = vmatprep.subr.mxu0 %v385
    %1694 = vmatpush1.msra.mxu0 %v384
    %1695 = vmatprep.subr.mxu0 %v381
    %1696 = vmatpush1.msra.mxu0 %v380
    %1697 = vmatprep.subr.mxu0 0.0
    %1698 = vmatpush2.msra.mxu0 0.0
    %1699 = vmatprep.subr.mxu0 0.0
    %1700 = vmatpush2.msra.mxu0 0.0
    %1701 = vmatprep.subr.mxu0 0.0
    %1702 = vmatpush2.msra.mxu0 0.0
    %1703 = vmatprep.subr.mxu0 0.0
    %1704 = vmatpush2.msra.mxu0 0.0
    %1705 = vmatprep.subr.mxu0 0.0
    %1706 = vmatpush2.msra.mxu0 0.0
    %1707 = vmatprep.subr.mxu0 0.0
    %1708 = vmatpush2.msra.mxu0 0.0
    %1709 = vmatprep.subr.mxu0 0.0
    %1710 = vmatpush2.msra.mxu0 0.0
    %1711 = vmatprep.subr.mxu0 0.0
    %1712 = vmatpush2.msra.mxu0 0.0
    %1713 = vmatprep.subr.mxu0 0.0
    %1714 = vmatpush2.msra.mxu0 0.0
    %1715 = vmatprep.subr.mxu0 0.0
    %1716 = vmatpush2.msra.mxu0 0.0
    %1717 = vmatprep.subr.mxu0 0.0
    %1718 = vmatpush2.msra.mxu0 0.0
    %1719 = vmatprep.subr.mxu0 0.0
    %1720 = vmatpush2.msra.mxu0 0.0
    %1721 = vmatprep.subr.mxu0 0.0
    %1722 = vmatpush2.msra.mxu0 0.0
    %1723 = vmatprep.subr.mxu0 0.0
    %1724 = vmatpush2.msra.mxu0 0.0
    %1725 = vmatprep.subr.mxu0 0.0
    %1726 = vmatpush2.msra.mxu0 0.0
    %1727 = vmatprep.subr.mxu0 0.0
    %1728 = vmatpush2.msra.mxu0 0.0
    %1729 = vmatprep.mubr.f32.mxu0 0.0
    %1730 = vmatmul.mubr.f32.gmra.mxu0 %v1659
    %v1731 = vpop.f32.mrf.mxu0
    %v1732 = vadd.f32 0.0, %v1731
    %v1733 = vpop.f32.mrf.mxu0
    %v1734 = vadd.f32 0.0, %v1733
    %1735 = vdwg.mxu0
    %1736 = vmatprep.subr.mxu0 %v443
    %1737 = vmatpush1.msra.mxu0 %v442
    %1738 = vmatprep.subr.mxu0 %v439
    %1739 = vmatpush1.msra.mxu0 %v438
    %1740 = vmatprep.subr.mxu0 %v435
    %1741 = vmatpush1.msra.mxu0 %v434
    %1742 = vmatprep.subr.mxu0 %v431
    %1743 = vmatpush1.msra.mxu0 %v430
    %1744 = vmatprep.subr.mxu0 %v427
    %1745 = vmatpush1.msra.mxu0 %v426
    %1746 = vmatprep.subr.mxu0 %v423
    %1747 = vmatpush1.msra.mxu0 %v422
    %1748 = vmatprep.subr.mxu0 %v419
    %1749 = vmatpush1.msra.mxu0 %v418
    %1750 = vmatprep.subr.mxu0 %v415
    %1751 = vmatpush1.msra.mxu0 %v414
    %1752 = vmatprep.subr.mxu0 %v411
    %1753 = vmatpush1.msra.mxu0 %v410
    %1754 = vmatprep.subr.mxu0 %v407
    %1755 = vmatpush1.msra.mxu0 %v406
    %1756 = vmatprep.subr.mxu0 %v403
    %1757 = vmatpush1.msra.mxu0 %v402
    %1758 = vmatprep.subr.mxu0 %v399
    %1759 = vmatpush1.msra.mxu0 %v398
    %1760 = vmatprep.subr.mxu0 %v395
    %1761 = vmatpush1.msra.mxu0 %v394
    %1762 = vmatprep.subr.mxu0 %v391
    %1763 = vmatpush1.msra.mxu0 %v390
    %1764 = vmatprep.subr.mxu0 %v387
    %1765 = vmatpush1.msra.mxu0 %v386
    %1766 = vmatprep.subr.mxu0 %v383
    %1767 = vmatpush1.msra.mxu0 %v382
    %1768 = vmatprep.subr.mxu0 0.0
    %1769 = vmatpush2.msra.mxu0 0.0
    %1770 = vmatprep.subr.mxu0 0.0
    %1771 = vmatpush2.msra.mxu0 0.0
    %1772 = vmatprep.subr.mxu0 0.0
    %1773 = vmatpush2.msra.mxu0 0.0
    %1774 = vmatprep.subr.mxu0 0.0
    %1775 = vmatpush2.msra.mxu0 0.0
    %1776 = vmatprep.subr.mxu0 0.0
    %1777 = vmatpush2.msra.mxu0 0.0
    %1778 = vmatprep.subr.mxu0 0.0
    %1779 = vmatpush2.msra.mxu0 0.0
    %1780 = vmatprep.subr.mxu0 0.0
    %1781 = vmatpush2.msra.mxu0 0.0
    %1782 = vmatprep.subr.mxu0 0.0
    %1783 = vmatpush2.msra.mxu0 0.0
    %1784 = vmatprep.subr.mxu0 0.0
    %1785 = vmatpush2.msra.mxu0 0.0
    %1786 = vmatprep.subr.mxu0 0.0
    %1787 = vmatpush2.msra.mxu0 0.0
    %1788 = vmatprep.subr.mxu0 0.0
    %1789 = vmatpush2.msra.mxu0 0.0
    %1790 = vmatprep.subr.mxu0 0.0
    %1791 = vmatpush2.msra.mxu0 0.0
    %1792 = vmatprep.subr.mxu0 0.0
    %1793 = vmatpush2.msra.mxu0 0.0
    %1794 = vmatprep.subr.mxu0 0.0
    %1795 = vmatpush2.msra.mxu0 0.0
    %1796 = vmatprep.subr.mxu0 0.0
    %1797 = vmatpush2.msra.mxu0 0.0
    %1798 = vmatprep.subr.mxu0 0.0
    %1799 = vmatpush2.msra.mxu0 0.0
    %1800 = vmatprep.mubr.f32.mxu0 0.0
    %1801 = vmatmul.mubr.f32.gmra.mxu0 %v1659
    %v1802 = vpop.f32.mrf.mxu0
    %v1803 = vadd.f32 0.0, %v1802
    %v1804 = vpop.f32.mrf.mxu0
    %v1805 = vadd.f32 0.0, %v1804
    %1806 = vdwg.mxu0
    %v1807 = vadd.f32 %v1661, %v1732
    %v1808 = vadd.f32 %v1662, %v1734
    %v1809 = vadd.f32 %v1663, %v1803
    %v1810 = vadd.f32 %v1664, %v1805
    %v1811 = vmul.f32 %v1807, 2.0
    %v1812 = vmul.f32 %v1808, 2.0
    %v1813 = vmul.f32 %v1809, 2.0
    %v1814 = vmul.f32 %v1810, 2.0
    %v1815 = vsel %vm457, %v1811, %v1807
    %v1816 = vsel %vm458, %v1812, %v1808
    %v1817 = vsel %vm459, %v1813, %v1809
    %v1818 = vsel %vm460, %v1814, %v1810
    %v1819 = vxor.u32 %v1815, 2147483648
    %v1820 = vxor.u32 %v1816, 2147483648
    %v1821 = vxor.u32 %v1817, 2147483648
    %v1822 = vxor.u32 %v1818, 2147483648
    %v1823 = vmul.f32 %v1819, 1.442695
    %v1824 = vpow.pop %v1823
    %v1825 = vmul.f32 %v1820, 1.442695
    %v1826 = vpow.pop %v1825
    %v1827 = vmul.f32 %v1821, 1.442695
    %v1828 = vpow.pop %v1827
    %v1829 = vmul.f32 %v1822, 1.442695
    %v1830 = vpow.pop %v1829
    %v1831 = vadd.f32 %v1824, 1.0
    %v1832 = vadd.f32 %v1826, 1.0
    %v1833 = vadd.f32 %v1828, 1.0
    %v1834 = vadd.f32 %v1830, 1.0
    %v1835 = vrcp.pop %v1831
    %v1836 = vmul.f32 1.0, %v1835
    %v1837 = vrcp.pop %v1832
    %v1838 = vmul.f32 1.0, %v1837
    %v1839 = vrcp.pop %v1833
    %v1840 = vmul.f32 1.0, %v1839
    %v1841 = vrcp.pop %v1834
    %v1842 = vmul.f32 1.0, %v1841
    %v1843 = vmul.f32 %v1836, 2.0
    %v1844 = vmul.f32 %v1838, 2.0
    %v1845 = vmul.f32 %v1840, 2.0
    %v1846 = vmul.f32 %v1842, 2.0
    %v1847 = vsub.f32 %v1843, 1.0
    %v1848 = vsub.f32 %v1844, 1.0
    %v1849 = vsub.f32 %v1845, 1.0
    %v1850 = vsub.f32 %v1846, 1.0
    %v1851 = vsel %vm457, %v1847, %v1836
    %v1852 = vsel %vm458, %v1848, %v1838
    %v1853 = vsel %vm459, %v1849, %v1840
    %v1854 = vsel %vm460, %v1850, %v1842
    %v1855 = vmul.f32 %v1852, %v1657
    %v1856 = vmul.f32 %v1851, %v1853
    %v1857 = vadd.f32 %v1855, %v1856
    %v1858 = vtanh.pop %v1857
    %v1859 = vmul.f32 %v1854, %v1858
    %1860 = vst [vmem:[#allocation3 + $0x30] sm:$0xff] %v1859
    %v1861 = vld [vmem:[#allocation2 + $0xe0] sm:$0xff]
    %v1862 = vld [vmem:[#allocation2 + $0xe8] sm:$0xff]
    %v1863 = vld [vmem:[#allocation2 + $0xf0] sm:$0xff]
    %v1864 = vld [vmem:[#allocation2 + $0xf8] sm:$0xff]
    %1865 = vmatprep.subr.mxu0 %v441
    %1866 = vmatpush1.msra.mxu0 %v440
    %1867 = vmatprep.subr.mxu0 %v437
    %1868 = vmatpush1.msra.mxu0 %v436
    %1869 = vmatprep.subr.mxu0 %v433
    %1870 = vmatpush1.msra.mxu0 %v432
    %1871 = vmatprep.subr.mxu0 %v429
    %1872 = vmatpush1.msra.mxu0 %v428
    %1873 = vmatprep.subr.mxu0 %v425
    %1874 = vmatpush1.msra.mxu0 %v424
    %1875 = vmatprep.subr.mxu0 %v421
    %1876 = vmatpush1.msra.mxu0 %v420
    %1877 = vmatprep.subr.mxu0 %v417
    %1878 = vmatpush1.msra.mxu0 %v416
    %1879 = vmatprep.subr.mxu0 %v413
    %1880 = vmatpush1.msra.mxu0 %v412
    %1881 = vmatprep.subr.mxu0 %v409
    %1882 = vmatpush1.msra.mxu0 %v408
    %1883 = vmatprep.subr.mxu0 %v405
    %1884 = vmatpush1.msra.mxu0 %v404
    %1885 = vmatprep.subr.mxu0 %v401
    %1886 = vmatpush1.msra.mxu0 %v400
    %1887 = vmatprep.subr.mxu0 %v397
    %1888 = vmatpush1.msra.mxu0 %v396
    %1889 = vmatprep.subr.mxu0 %v393
    %1890 = vmatpush1.msra.mxu0 %v392
    %1891 = vmatprep.subr.mxu0 %v389
    %1892 = vmatpush1.msra.mxu0 %v388
    %1893 = vmatprep.subr.mxu0 %v385
    %1894 = vmatpush1.msra.mxu0 %v384
    %1895 = vmatprep.subr.mxu0 %v381
    %1896 = vmatpush1.msra.mxu0 %v380
    %1897 = vmatprep.subr.mxu0 0.0
    %1898 = vmatpush2.msra.mxu0 0.0
    %1899 = vmatprep.subr.mxu0 0.0
    %1900 = vmatpush2.msra.mxu0 0.0
    %1901 = vmatprep.subr.mxu0 0.0
    %1902 = vmatpush2.msra.mxu0 0.0
    %1903 = vmatprep.subr.mxu0 0.0
    %1904 = vmatpush2.msra.mxu0 0.0
    %1905 = vmatprep.subr.mxu0 0.0
    %1906 = vmatpush2.msra.mxu0 0.0
    %1907 = vmatprep.subr.mxu0 0.0
    %1908 = vmatpush2.msra.mxu0 0.0
    %1909 = vmatprep.subr.mxu0 0.0
    %1910 = vmatpush2.msra.mxu0 0.0
    %1911 = vmatprep.subr.mxu0 0.0
    %1912 = vmatpush2.msra.mxu0 0.0
    %1913 = vmatprep.subr.mxu0 0.0
    %1914 = vmatpush2.msra.mxu0 0.0
    %1915 = vmatprep.subr.mxu0 0.0
    %1916 = vmatpush2.msra.mxu0 0.0
    %1917 = vmatprep.subr.mxu0 0.0
    %1918 = vmatpush2.msra.mxu0 0.0
    %1919 = vmatprep.subr.mxu0 0.0
    %1920 = vmatpush2.msra.mxu0 0.0
    %1921 = vmatprep.subr.mxu0 0.0
    %1922 = vmatpush2.msra.mxu0 0.0
    %1923 = vmatprep.subr.mxu0 0.0
    %1924 = vmatpush2.msra.mxu0 0.0
    %1925 = vmatprep.subr.mxu0 0.0
    %1926 = vmatpush2.msra.mxu0 0.0
    %1927 = vmatprep.subr.mxu0 0.0
    %1928 = vmatpush2.msra.mxu0 0.0
    %1929 = vmatprep.mubr.f32.mxu0 0.0
    %1930 = vmatmul.mubr.f32.gmra.mxu0 %v1859
    %v1931 = vpop.f32.mrf.mxu0
    %v1932 = vadd.f32 0.0, %v1931
    %v1933 = vpop.f32.mrf.mxu0
    %v1934 = vadd.f32 0.0, %v1933
    %1935 = vdwg.mxu0
    %1936 = vmatprep.subr.mxu0 %v443
    %1937 = vmatpush1.msra.mxu0 %v442
    %1938 = vmatprep.subr.mxu0 %v439
    %1939 = vmatpush1.msra.mxu0 %v438
    %1940 = vmatprep.subr.mxu0 %v435
    %1941 = vmatpush1.msra.mxu0 %v434
    %1942 = vmatprep.subr.mxu0 %v431
    %1943 = vmatpush1.msra.mxu0 %v430
    %1944 = vmatprep.subr.mxu0 %v427
    %1945 = vmatpush1.msra.mxu0 %v426
    %1946 = vmatprep.subr.mxu0 %v423
    %1947 = vmatpush1.msra.mxu0 %v422
    %1948 = vmatprep.subr.mxu0 %v419
    %1949 = vmatpush1.msra.mxu0 %v418
    %1950 = vmatprep.subr.mxu0 %v415
    %1951 = vmatpush1.msra.mxu0 %v414
    %1952 = vmatprep.subr.mxu0 %v411
    %1953 = vmatpush1.msra.mxu0 %v410
    %1954 = vmatprep.subr.mxu0 %v407
    %1955 = vmatpush1.msra.mxu0 %v406
    %1956 = vmatprep.subr.mxu0 %v403
    %1957 = vmatpush1.msra.mxu0 %v402
    %1958 = vmatprep.subr.mxu0 %v399
    %1959 = vmatpush1.msra.mxu0 %v398
    %1960 = vmatprep.subr.mxu0 %v395
    %1961 = vmatpush1.msra.mxu0 %v394
    %1962 = vmatprep.subr.mxu0 %v391
    %1963 = vmatpush1.msra.mxu0 %v390
    %1964 = vmatprep.subr.mxu0 %v387
    %1965 = vmatpush1.msra.mxu0 %v386
    %1966 = vmatprep.subr.mxu0 %v383
    %1967 = vmatpush1.msra.mxu0 %v382
    %1968 = vmatprep.subr.mxu0 0.0
    %1969 = vmatpush2.msra.mxu0 0.0
    %1970 = vmatprep.subr.mxu0 0.0
    %1971 = vmatpush2.msra.mxu0 0.0
    %1972 = vmatprep.subr.mxu0 0.0
    %1973 = vmatpush2.msra.mxu0 0.0
    %1974 = vmatprep.subr.mxu0 0.0
    %1975 = vmatpush2.msra.mxu0 0.0
    %1976 = vmatprep.subr.mxu0 0.0
    %1977 = vmatpush2.msra.mxu0 0.0
    %1978 = vmatprep.subr.mxu0 0.0
    %1979 = vmatpush2.msra.mxu0 0.0
    %1980 = vmatprep.subr.mxu0 0.0
    %1981 = vmatpush2.msra.mxu0 0.0
    %1982 = vmatprep.subr.mxu0 0.0
    %1983 = vmatpush2.msra.mxu0 0.0
    %1984 = vmatprep.subr.mxu0 0.0
    %1985 = vmatpush2.msra.mxu0 0.0
    %1986 = vmatprep.subr.mxu0 0.0
    %1987 = vmatpush2.msra.mxu0 0.0
    %1988 = vmatprep.subr.mxu0 0.0
    %1989 = vmatpush2.msra.mxu0 0.0
    %1990 = vmatprep.subr.mxu0 0.0
    %1991 = vmatpush2.msra.mxu0 0.0
    %1992 = vmatprep.subr.mxu0 0.0
    %1993 = vmatpush2.msra.mxu0 0.0
    %1994 = vmatprep.subr.mxu0 0.0
    %1995 = vmatpush2.msra.mxu0 0.0
    %1996 = vmatprep.subr.mxu0 0.0
    %1997 = vmatpush2.msra.mxu0 0.0
    %1998 = vmatprep.subr.mxu0 0.0
    %1999 = vmatpush2.msra.mxu0 0.0
    %2000 = vmatprep.mubr.f32.mxu0 0.0
    %2001 = vmatmul.mubr.f32.gmra.mxu0 %v1859
    %v2002 = vpop.f32.mrf.mxu0
    %v2003 = vadd.f32 0.0, %v2002
    %v2004 = vpop.f32.mrf.mxu0
    %v2005 = vadd.f32 0.0, %v2004
    %2006 = vdwg.mxu0
    %v2007 = vadd.f32 %v1861, %v1932
    %v2008 = vadd.f32 %v1862, %v1934
    %v2009 = vadd.f32 %v1863, %v2003
    %v2010 = vadd.f32 %v1864, %v2005
    %v2011 = vmul.f32 %v2007, 2.0
    %v2012 = vmul.f32 %v2008, 2.0
    %v2013 = vmul.f32 %v2009, 2.0
    %v2014 = vmul.f32 %v2010, 2.0
    %v2015 = vsel %vm457, %v2011, %v2007
    %v2016 = vsel %vm458, %v2012, %v2008
    %v2017 = vsel %vm459, %v2013, %v2009
    %v2018 = vsel %vm460, %v2014, %v2010
    %v2019 = vxor.u32 %v2015, 2147483648
    %v2020 = vxor.u32 %v2016, 2147483648
    %v2021 = vxor.u32 %v2017, 2147483648
    %v2022 = vxor.u32 %v2018, 2147483648
    %v2023 = vmul.f32 %v2019, 1.442695
    %v2024 = vpow.pop %v2023
    %v2025 = vmul.f32 %v2020, 1.442695
    %v2026 = vpow.pop %v2025
    %v2027 = vmul.f32 %v2021, 1.442695
    %v2028 = vpow.pop %v2027
    %v2029 = vmul.f32 %v2022, 1.442695
    %v2030 = vpow.pop %v2029
    %v2031 = vadd.f32 %v2024, 1.0
    %v2032 = vadd.f32 %v2026, 1.0
    %v2033 = vadd.f32 %v2028, 1.0
    %v2034 = vadd.f32 %v2030, 1.0
    %v2035 = vrcp.pop %v2031
    %v2036 = vmul.f32 1.0, %v2035
    %v2037 = vrcp.pop %v2032
    %v2038 = vmul.f32 1.0, %v2037
    %v2039 = vrcp.pop %v2033
    %v2040 = vmul.f32 1.0, %v2039
    %v2041 = vrcp.pop %v2034
    %v2042 = vmul.f32 1.0, %v2041
    %v2043 = vmul.f32 %v2036, 2.0
    %v2044 = vmul.f32 %v2038, 2.0
    %v2045 = vmul.f32 %v2040, 2.0
    %v2046 = vmul.f32 %v2042, 2.0
    %v2047 = vsub.f32 %v2043, 1.0
    %v2048 = vsub.f32 %v2044, 1.0
    %v2049 = vsub.f32 %v2045, 1.0
    %v2050 = vsub.f32 %v2046, 1.0
    %v2051 = vsel %vm457, %v2047, %v2036
    %v2052 = vsel %vm458, %v2048, %v2038
    %v2053 = vsel %vm459, %v2049, %v2040
    %v2054 = vsel %vm460, %v2050, %v2042
    %v2055 = vmul.f32 %v2052, %v1857
    %v2056 = vmul.f32 %v2051, %v2053
    %v2057 = vadd.f32 %v2055, %v2056
    %v2058 = vtanh.pop %v2057
    %v2059 = vmul.f32 %v2054, %v2058
    %2060 = vst [vmem:[#allocation3 + $0x38] sm:$0xff] %v2059
    %v2061 = vld [vmem:[#allocation3] sm:$0xff]
    %v2062 = vld [vmem:[#allocation3 + $0x8] sm:$0xff]
    %v2063 = vld [vmem:[#allocation3 + $0x10] sm:$0xff]
    %v2064 = vld [vmem:[#allocation3 + $0x18] sm:$0xff]
    %v2065 = vld [vmem:[#allocation3 + $0x20] sm:$0xff]
    %v2066 = vld [vmem:[#allocation3 + $0x28] sm:$0xff]
    %v2067 = vld [vmem:[#allocation3 + $0x30] sm:$0xff]
    %v2068 = vld [vmem:[#allocation3 + $0x38] sm:$0xff]
    %v2069 = vld [vmem:[#allocation7] sm:$0xff]
    %v2070 = vld [vmem:[#allocation7 + $0x8] sm:$0xff]
    %v2071 = vld [vmem:[#allocation7 + $0x10] sm:$0xff]
    %v2072 = vld [vmem:[#allocation7 + $0x18] sm:$0xff]
    %v2073 = vld [vmem:[#allocation7 + $0x20] sm:$0xff]
    %v2074 = vld [vmem:[#allocation7 + $0x28] sm:$0xff]
    %v2075 = vld [vmem:[#allocation7 + $0x30] sm:$0xff]
    %v2076 = vld [vmem:[#allocation7 + $0x38] sm:$0xff]
    %v2077 = vld [vmem:[#allocation7 + $0x40] sm:$0xff]
    %v2078 = vld [vmem:[#allocation7 + $0x48] sm:$0xff]
    %v2079 = vld [vmem:[#allocation7 + $0x50] sm:$0xff]
    %v2080 = vld [vmem:[#allocation7 + $0x58] sm:$0xff]
    %v2081 = vld [vmem:[#allocation7 + $0x60] sm:$0xff]
    %v2082 = vld [vmem:[#allocation7 + $0x68] sm:$0xff]
    %v2083 = vld [vmem:[#allocation7 + $0x70] sm:$0xff]
    %v2084 = vld [vmem:[#allocation7 + $0x78] sm:$0xff]
    %v2085 = vld [vmem:[%s5] sm:$0x1]
    %v2087 = vlaneseq
    %v2088 = vshrl.u32 %v2087, 7
    %v2089 = vsub.s32 0, %v2088
    %v2090 = vrot.slane %v2085, %v2089
    %2092 = vmatprep.subr.mxu0 0.0
    %2093 = vmatpush1.msra.mxu0 %v2084
    %2094 = vmatprep.subr.mxu0 0.0
    %2095 = vmatpush1.msra.mxu0 %v2083
    %2096 = vmatprep.subr.mxu0 0.0
    %2097 = vmatpush1.msra.mxu0 %v2082
    %2098 = vmatprep.subr.mxu0 0.0
    %2099 = vmatpush1.msra.mxu0 %v2081
    %2100 = vmatprep.subr.mxu0 0.0
    %2101 = vmatpush1.msra.mxu0 %v2080
    %2102 = vmatprep.subr.mxu0 0.0
    %2103 = vmatpush1.msra.mxu0 %v2079
    %2104 = vmatprep.subr.mxu0 0.0
    %2105 = vmatpush1.msra.mxu0 %v2078
    %2106 = vmatprep.subr.mxu0 0.0
    %2107 = vmatpush1.msra.mxu0 %v2077
    %2108 = vmatprep.subr.mxu0 0.0
    %2109 = vmatpush1.msra.mxu0 %v2076
    %2110 = vmatprep.subr.mxu0 0.0
    %2111 = vmatpush1.msra.mxu0 %v2075
    %2112 = vmatprep.subr.mxu0 0.0
    %2113 = vmatpush1.msra.mxu0 %v2074
    %2114 = vmatprep.subr.mxu0 0.0
    %2115 = vmatpush1.msra.mxu0 %v2073
    %2116 = vmatprep.subr.mxu0 0.0
    %2117 = vmatpush1.msra.mxu0 %v2072
    %2118 = vmatprep.subr.mxu0 0.0
    %2119 = vmatpush1.msra.mxu0 %v2071
    %2120 = vmatprep.subr.mxu0 0.0
    %2121 = vmatpush1.msra.mxu0 %v2070
    %2122 = vmatprep.subr.mxu0 0.0
    %2123 = vmatpush1.msra.mxu0 %v2069
    %2124 = vmatprep.subr.mxu0 0.0
    %2125 = vmatpush2.msra.mxu0 0.0
    %2126 = vmatprep.subr.mxu0 0.0
    %2127 = vmatpush2.msra.mxu0 0.0
    %2128 = vmatprep.subr.mxu0 0.0
    %2129 = vmatpush2.msra.mxu0 0.0
    %2130 = vmatprep.subr.mxu0 0.0
    %2131 = vmatpush2.msra.mxu0 0.0
    %2132 = vmatprep.subr.mxu0 0.0
    %2133 = vmatpush2.msra.mxu0 0.0
    %2134 = vmatprep.subr.mxu0 0.0
    %2135 = vmatpush2.msra.mxu0 0.0
    %2136 = vmatprep.subr.mxu0 0.0
    %2137 = vmatpush2.msra.mxu0 0.0
    %2138 = vmatprep.subr.mxu0 0.0
    %2139 = vmatpush2.msra.mxu0 0.0
    %2140 = vmatprep.subr.mxu0 0.0
    %2141 = vmatpush2.msra.mxu0 0.0
    %2142 = vmatprep.subr.mxu0 0.0
    %2143 = vmatpush2.msra.mxu0 0.0
    %2144 = vmatprep.subr.mxu0 0.0
    %2145 = vmatpush2.msra.mxu0 0.0
    %2146 = vmatprep.subr.mxu0 0.0
    %2147 = vmatpush2.msra.mxu0 0.0
    %2148 = vmatprep.subr.mxu0 0.0
    %2149 = vmatpush2.msra.mxu0 0.0
    %2150 = vmatprep.subr.mxu0 0.0
    %2151 = vmatpush2.msra.mxu0 0.0
    %2152 = vmatprep.subr.mxu0 0.0
    %2153 = vmatpush2.msra.mxu0 0.0
    %2154 = vmatprep.subr.mxu0 0.0
    %2155 = vmatpush2.msra.mxu0 0.0
    %2156 = vmatprep.mubr.f32.mxu0 0.0
    %2157 = vmatmul.mubr.f32.gmra.mxu0 %v2061
    %v2158 = vpop.f32.mrf.mxu0
    %v2159 = vadd.f32 %v2090, %v2158
    %v2160 = vpop.f32.mrf.mxu0
    %2161 = vmatprep.mubr.f32.mxu0 0.0
    %2162 = vmatmul.mubr.f32.gmra.mxu0 %v2062
    %v2163 = vpop.f32.mrf.mxu0
    %v2164 = vadd.f32 %v2090, %v2163
    %v2165 = vpop.f32.mrf.mxu0
    %2166 = vmatprep.mubr.f32.mxu0 0.0
    %2167 = vmatmul.mubr.f32.gmra.mxu0 %v2063
    %v2168 = vpop.f32.mrf.mxu0
    %v2169 = vadd.f32 %v2090, %v2168
    %v2170 = vpop.f32.mrf.mxu0
    %2171 = vmatprep.mubr.f32.mxu0 0.0
    %2172 = vmatmul.mubr.f32.gmra.mxu0 %v2064
    %v2173 = vpop.f32.mrf.mxu0
    %v2174 = vadd.f32 %v2090, %v2173
    %v2175 = vpop.f32.mrf.mxu0
    %2176 = vmatprep.mubr.f32.mxu0 0.0
    %2177 = vmatmul.mubr.f32.gmra.mxu0 %v2065
    %v2178 = vpop.f32.mrf.mxu0
    %v2179 = vadd.f32 %v2090, %v2178
    %v2180 = vpop.f32.mrf.mxu0
    %2181 = vmatprep.mubr.f32.mxu0 0.0
    %2182 = vmatmul.mubr.f32.gmra.mxu0 %v2066
    %v2183 = vpop.f32.mrf.mxu0
    %v2184 = vadd.f32 %v2090, %v2183
    %v2185 = vpop.f32.mrf.mxu0
    %2186 = vmatprep.mubr.f32.mxu0 0.0
    %2187 = vmatmul.mubr.f32.gmra.mxu0 %v2067
    %v2188 = vpop.f32.mrf.mxu0
    %v2189 = vadd.f32 %v2090, %v2188
    %v2190 = vpop.f32.mrf.mxu0
    %2191 = vmatprep.mubr.f32.mxu0 0.0
    %2192 = vmatmul.mubr.f32.gmra.mxu0 %v2068
    %v2193 = vpop.f32.mrf.mxu0
    %v2194 = vadd.f32 %v2090, %v2193
    %v2195 = vpop.f32.mrf.mxu0
    %2196 = vdwg.mxu0
    %v2197 = vmul.f32 %v2159, %v2059
    %v2198 = vmul.f32 %v2164, %v2059
    %v2199 = vmul.f32 %v2169, %v2059
    %v2200 = vmul.f32 %v2174, %v2059
    %v2201 = vmul.f32 %v2179, %v2059
    %v2202 = vmul.f32 %v2184, %v2059
    %v2203 = vmul.f32 %v2189, %v2059
    %v2204 = vmul.f32 %v2194, %v2059
    %2205 = vadd.xlane.f32.xlu0 %v2197
    %v2206 = vpop.xlane.xlu0 %2205
    %2207 = vadd.xlane.f32.xlu0 %v2198
    %v2208 = vpop.xlane.xlu0 %2207
    %2209 = vadd.xlane.f32.xlu0 %v2199
    %v2210 = vpop.xlane.xlu0 %2209
    %2211 = vadd.xlane.f32.xlu0 %v2200
    %v2212 = vpop.xlane.xlu0 %2211
    %2213 = vadd.xlane.f32.xlu0 %v2201
    %v2214 = vpop.xlane.xlu0 %2213
    %2215 = vadd.xlane.f32.xlu0 %v2202
    %v2216 = vpop.xlane.xlu0 %2215
    %2217 = vadd.xlane.f32.xlu0 %v2203
    %v2218 = vpop.xlane.xlu0 %2217
    %2219 = vadd.xlane.f32.xlu0 %v2204
    %v2220 = vpop.xlane.xlu0 %2219
    %v2221 = vmax.f32 %v2206, %v2214
    %v2222 = vmax.f32 %v2208, %v2216
    %v2223 = vmax.f32 %v2210, %v2218
    %v2224 = vmax.f32 %v2212, %v2220
    %v2225 = vmax.f32 %v2221, %v2222
    %v2226 = vmax.f32 %v2223, %v2224
    %v2227 = vmax.f32 %v2225, %v2226
    %v2228 = vsub.f32 %v2206, %v2227
    %v2229 = vsub.f32 %v2208, %v2227
    %v2230 = vsub.f32 %v2210, %v2227
    %v2231 = vsub.f32 %v2212, %v2227
    %v2232 = vsub.f32 %v2214, %v2227
    %v2233 = vsub.f32 %v2216, %v2227
    %v2234 = vsub.f32 %v2218, %v2227
    %v2235 = vsub.f32 %v2220, %v2227
    %v2236 = vmul.f32 %v2228, 1.442695
    %v2237 = vpow.pop %v2236
    %v2238 = vmul.f32 %v2229, 1.442695
    %v2239 = vpow.pop %v2238
    %v2240 = vmul.f32 %v2230, 1.442695
    %v2241 = vpow.pop %v2240
    %v2242 = vmul.f32 %v2231, 1.442695
    %v2243 = vpow.pop %v2242
    %v2244 = vmul.f32 %v2232, 1.442695
    %v2245 = vpow.pop %v2244
    %v2246 = vmul.f32 %v2233, 1.442695
    %v2247 = vpow.pop %v2246
    %v2248 = vmul.f32 %v2234, 1.442695
    %v2249 = vpow.pop %v2248
    %v2250 = vmul.f32 %v2235, 1.442695
    %v2251 = vpow.pop %v2250
    %v2252 = vadd.f32 %v2237, %v2239
    %v2253 = vadd.f32 %v2252, %v2241
    %v2254 = vadd.f32 %v2253, %v2243
    %v2255 = vadd.f32 %v2254, %v2245
    %v2256 = vadd.f32 %v2255, %v2247
    %v2257 = vadd.f32 %v2256, %v2249
    %v2258 = vadd.f32 %v2257, %v2251
    %v2259 = vrcp.pop %v2258
    %v2260 = vmul.f32 %v2237, %v2259
    %v2261 = vmul.f32 %v2239, %v2259
    %v2262 = vmul.f32 %v2241, %v2259
    %v2263 = vmul.f32 %v2243, %v2259
    %v2264 = vmul.f32 %v2245, %v2259
    %v2265 = vmul.f32 %v2247, %v2259
    %v2266 = vmul.f32 %v2249, %v2259
    %v2267 = vmul.f32 %v2251, %v2259
    %v2268 = vmul.f32 %v2159, %v2260
    %v2269 = vmul.f32 %v2164, %v2261
    %v2270 = vmul.f32 %v2169, %v2262
    %v2271 = vmul.f32 %v2174, %v2263
    %v2272 = vmul.f32 %v2179, %v2264
    %v2273 = vmul.f32 %v2184, %v2265
    %v2274 = vmul.f32 %v2189, %v2266
    %v2275 = vmul.f32 %v2194, %v2267
    %v2276 = vadd.f32 %v2268, %v2269
    %v2277 = vadd.f32 %v2276, %v2270
    %v2278 = vadd.f32 %v2277, %v2271
    %v2279 = vadd.f32 %v2278, %v2272
    %v2280 = vadd.f32 %v2279, %v2273
    %v2281 = vadd.f32 %v2280, %v2274
    %v2282 = vadd.f32 %v2281, %v2275
    %2283 = vst [vmem:[#allocation9] sm:$0xff] %v2282
    // Predicated region
    $region34: #{tpu_custom_call.1} parent=1 // pred_check
      _
    $region35: #{tpu_custom_call.1} parent=1 // pred_check_branch
      %2285 = sbr.rel (0) target = $region37
    $region36: #{tpu_custom_call.1} parent=1 // pred_region
      %s2287 = ssub.s32 128, 128
      %2288 = vsyncadd [#allocation6], %s2287
      %s2290 = sshll.u32 [#allocation9], 4
      %s2291 = int_to_ptr.vmem [resolvable:$true] %s2290
      %2293 = dma.vmem_to_hbm [thread:$0]  %s2291, 128, %s6, [#allocation6]
    $region37: #{tpu_custom_call.1} parent=1 // pred_fallthru
      _
    // Predicated region
    $region38: #{tpu_custom_call.1} parent=1 // pred_check
      _
    $region39: #{tpu_custom_call.1} parent=1 // pred_check_branch
      %2295 = sbr.rel (0) target = $region41
    $region40: #{tpu_custom_call.1} parent=1 // pred_region
      %2296 = dma.done [#allocation6], 128
    $region41: #{tpu_custom_call.1} parent=1 // pred_fallthru
      _
    %2297 = vsyncpa [#allocation5], 1
    %2298 = vsyncpa [#allocation8], 1
    %2299 = vsyncpa [#allocation6], 1

</llo_original>
